<compile_context>
chip_gen: v7x
topology: tpu7x:2x2x1
jax: 0.10.0
libtpu: 0.0.40
codegen_flags: <defaults>
</compile_context>

<pallas_src>
import functools

import numpy as np

import jax
import jax.numpy as jnp
from jax.experimental import pallas as pl
from jax.experimental.pallas import tpu as pltpu

_EPS = 1e-5      # nn.BatchNorm2d default eps
_RPAD = 16       # halo rows (>=1 needed; 16 keeps the bf16 interior store sublane-aligned)


# ----------------------------- elementwise math -----------------------------

def _polynomial(x):
    # polynomial(x) = (2 - x)*x for x > 0 ; (2 + x)*x for x <= 0
    return jnp.where(x <= 0.0, (2.0 + x) * x, (2.0 - x) * x)


def _sign(x):
    # matches torch.sign (sign(0) == 0)
    return jnp.where(x > 0.0, 1.0, jnp.where(x < 0.0, -1.0, 0.0))


# ----------------------------- fused Pallas kernel -----------------------------

def _fused_block_kernel(H, W, C, RPAD,
                        x_ref, w1_ref, w2_ref, g1_ref, b1_ref, g2_ref, b2_ref,
                        out_ref, stage_ref):
    """Single-invocation fused ResNetBlock_B forward.

    Layout: row r = n*H + h, lane l = w*C + c.
      x_ref     : (R, L) f32   input activation, R = N*H, L = W*C
      w*_ref    : (3L, L) bf16 block-banded conv weights; block dy carries all dx taps
      g*/b*_ref : (1, L) f32   BN gamma/beta pre-broadcast over the W lane groups
      out_ref   : (R, L) f32
      stage_ref : (R + 2*RPAD, L) bf16  halo-padded staging for the dy-shifted reads
    """
    R, L = x_ref.shape
    inv_count = 1.0 / float(R * W)            # elements per channel for BN stats

    # ---- hoisted image-boundary masks (only dy=0 / dy=2 need them; reused by both convs)
    h_idx = jax.lax.broadcasted_iota(jnp.int32, (R, 1), 0) % H
    mask_top = (h_idx >= 1).astype(jnp.bfloat16)        # input row h-1 exists in same image
    mask_bot = (h_idx <= H - 2).astype(jnp.bfloat16)    # input row h+1 exists in same image

    def conv3x3(w_ref):
        """3x3 / stride-1 / pad-1 conv of the slab currently staged in stage_ref:
        3 accumulating bf16 matmuls (K = N = L) on dy-shifted rows; dx taps + width
        padding live inside the banded weight blocks."""
        acc = jnp.zeros((R, L), jnp.float32)
        for dy in range(3):
            blk = stage_ref[pl.ds(RPAD + dy - 1, R), :]          # (R, L) bf16
            if dy == 0:
                blk = blk * mask_top
            elif dy == 2:
                blk = blk * mask_bot
            wk = w_ref[pl.ds(dy * L, L), :]                      # (L, L) bf16, aligned slice
            acc = acc + jnp.dot(blk, wk, preferred_element_type=jnp.float32)
        return acc

    def fold_w(s):
        """(1, L) f32 -> per-channel sum over the W lane groups, broadcast back over W.
        Circular lane rotations keep the channel congruence class; log-tree when W is 2^k."""
        if W & (W - 1) == 0:
            shift, n = C, W
            while n > 1:
                s = s + pltpu.roll(s, shift, 1)
                shift *= 2
                n //= 2
            return s
        total = s
        for j in range(1, W):
            total = total + pltpu.roll(s, j * C, 1)
        return total

    def bn_train(y, gamma, beta):
        # training-mode BatchNorm2d: one-pass batch stats (biased variance)
        mean = fold_w(jnp.sum(y, axis=0, keepdims=True)) * inv_count
        ex2 = fold_w(jnp.sum(y * y, axis=0, keepdims=True)) * inv_count
        var = ex2 - mean * mean
        scale = jax.lax.rsqrt(var + _EPS) * gamma
        return (y - mean) * scale + beta

    # ---- prep: binarized conv1 input (residual polynomial(x) is recomputed at the end)
    x = x_ref[...]
    xb = _sign(_polynomial(x))                 # exactly {-1, 0, +1}

    # zero only the halo rows once; the interior is overwritten before each conv
    stage_ref[pl.ds(0, RPAD), :] = jnp.zeros((RPAD, L), jnp.bfloat16)
    stage_ref[pl.ds(RPAD + R, RPAD), :] = jnp.zeros((RPAD, L), jnp.bfloat16)

    # ---- conv1 + bn1 + hardtanh ----
    stage_ref[pl.ds(RPAD, R), :] = xb.astype(jnp.bfloat16)
    y1 = conv3x3(w1_ref)
    o1 = jnp.clip(bn_train(y1, g1_ref[...], b1_ref[...]), -1.0, 1.0)   # Hardtanh

    # binarize(polynomial(o1)) == sign(o1) exactly: |o1| <= 1 and polynomial preserves sign
    stage_ref[pl.ds(RPAD, R), :] = _sign(o1).astype(jnp.bfloat16)

    # ---- conv2 + bn2 + residual add + hardtanh ----
    y2 = conv3x3(w2_ref)
    y2n = bn_train(y2, g2_ref[...], b2_ref[...])
    out_ref[...] = jnp.clip(y2n + _polynomial(x), -1.0, 1.0)


# ----------------------------- host-side packing (runs once, outside jit) -------------------

def pack_conv3x3_banded(w, width):
    """PyTorch weight (Cout, Cin, 3, 3) -> (3*width*Cin, width*Cout) bf16.

    Row block dy maps the dy-shifted input row (lane = wi*Cin + ci) to the output row
    (lane = wo*Cout + co):  B[dy, wi*Cin+ci, wo*Cout+co] = w[co, ci, dy, wi-wo+1]
    for |wi - wo| <= 1, else 0 -- the dx taps and width zero-padding live in the band."""
    w = np.asarray(w, np.float32)
    cout, cin, kh, kw = w.shape
    assert (kh, kw) == (3, 3)
    b = np.zeros((3, width, cin, width, cout), np.float32)
    for dy in range(3):
        for dx in range(3):
            wt = np.transpose(w[:, :, dy, dx])              # (Cin, Cout)
            for wo in range(width):
                wi = wo + dx - 1
                if 0 <= wi < width:
                    b[dy, wi, :, wo, :] = wt
    return jnp.asarray(b.reshape(3 * width * cin, width * cout), jnp.bfloat16)


def pack_bn_vec(v, width):
    """(C,) -> (1, width*C) f32, value broadcast over the W lane groups (lane = w*C + c)."""
    v = np.asarray(v, np.float32).reshape(-1)
    return jnp.asarray(np.tile(v, width).reshape(1, -1), jnp.float32)


# ----------------------------- public forward -----------------------------

@jax.jit
def resnet_block_b_forward(x_nchw, w1_packed, w2_packed, g1p, b1p, g2p, b2p):
    # downsample=False, stride1=1 (identity residual); weights already packed on the host.
    N, C, H, W = x_nchw.shape
    R, L = N * H, W * C
    assert L % 128 == 0, "need W*C to be a multiple of 128 for the lane-dense layout"
    assert R % 8 == 0, "need N*H to be a multiple of 8"
    assert w1_packed.shape == (3 * L, L) and w2_packed.shape == (3 * L, L)

    # (N, C, H, W) -> (N*H, W*C):  a[n*H+h, w*C+c] = x[n, c, h, w]
    a = jnp.transpose(x_nchw, (0, 2, 3, 1)).reshape(R, L).astype(jnp.float32)

    kernel = functools.partial(_fused_block_kernel, H, W, C, _RPAD)

    out2d = pl.pallas_call(
        kernel,
        out_shape=jax.ShapeDtypeStruct((R, L), jnp.float32),
        in_specs=[pl.BlockSpec(memory_space=pltpu.MemorySpace.VMEM)] * 7,
        out_specs=pl.BlockSpec(memory_space=pltpu.MemorySpace.VMEM),
        scratch_shapes=[
            pltpu.VMEM((R + 2 * _RPAD, L), jnp.bfloat16),   # halo-padded bf16 staging buffer
        ],
        compiler_params=pltpu.CompilerParams(vmem_limit_bytes=32 * 1024 * 1024),
    )(a, w1_packed, w2_packed, g1p, b1p, g2p, b2p)

    return jnp.transpose(out2d.reshape(N, H, W, C), (0, 3, 1, 2))   # back to NCHW


# ----------------------------- pure-JAX reference (for the in-script check) ------------------

def _reference_forward(x, w1, w2, g1, b1, g2, b2):
    # Weights rounded to bf16 to match the kernel's MXU operands; activations are exact.
    w1 = w1.astype(jnp.bfloat16).astype(jnp.float32)
    w2 = w2.astype(jnp.bfloat16).astype(jnp.float32)

    def conv(a, w):
        return jax.lax.conv_general_dilated(
            a, w, window_strides=(1, 1), padding=((1, 1), (1, 1)),
            dimension_numbers=("NCHW", "OIHW", "NCHW"))

    def bn(y, g, b):
        mean = jnp.mean(y, axis=(0, 2, 3), keepdims=True)
        var = jnp.mean(jnp.square(y - mean), axis=(0, 2, 3), keepdims=True)
        return ((y - mean) * jax.lax.rsqrt(var + _EPS)
                * g.reshape(1, -1, 1, 1) + b.reshape(1, -1, 1, 1))

    p = _polynomial(x)
    xb = _sign(p)
    o1 = jnp.clip(bn(conv(xb, w1), g1, b1), -1.0, 1.0)
    o1b = _sign(_polynomial(o1))
    return jnp.clip(bn(conv(o1b, w2), g2, b2) + p, -1.0, 1.0)


# ----------------------------- main -----------------------------

if __name__ == "__main__":
    N, C, H, W = 2, 16, 16, 16        # module defaults: in_size = out_size = 16, downsample=False
    key = jax.random.PRNGKey(0)
    kx, k1, k2, k3 = jax.random.split(key, 4)

    x = jax.random.normal(kx, (N, C, H, W), dtype=jnp.float32)              # NCHW like PyTorch
    conv1_w = jax.random.normal(k1, (C, C, 3, 3), dtype=jnp.float32) * 0.2
    conv2_w = jax.random.normal(k2, (C, C, 3, 3), dtype=jnp.float32) * 0.2
    conv3_w = jax.random.normal(k3, (C, C, 1, 1), dtype=jnp.float32) * 0.2  # unused (no downsample)

    # nn.BatchNorm2d(affine=True) default init
    gamma1 = jnp.ones((C,), jnp.float32)
    beta1 = jnp.zeros((C,), jnp.float32)
    gamma2 = jnp.ones((C,), jnp.float32)
    beta2 = jnp.zeros((C,), jnp.float32)

    # One-time host-side packing (kept outside the jitted forward per the perf review).
    w1p = pack_conv3x3_banded(conv1_w, W)
    w2p = pack_conv3x3_banded(conv2_w, W)
    g1p, b1p = pack_bn_vec(gamma1, W), pack_bn_vec(beta1, W)
    g2p, b2p = pack_bn_vec(gamma2, W), pack_bn_vec(beta2, W)

    out = resnet_block_b_forward(x, w1p, w2p, g1p, b1p, g2p, b2p)
    out = jax.block_until_ready(out)

    assert out.shape == (N, C, H, W)
    assert bool(jnp.all(jnp.isfinite(out)))

    ref = _reference_forward(x, conv1_w, conv2_w, gamma1, beta1, gamma2, beta2)
    close = jnp.abs(out - ref) <= (1e-3 + 1e-3 * jnp.abs(ref))
    frac_close = float(jnp.mean(close.astype(jnp.float32)))
    assert frac_close > 0.99, f"kernel/reference mismatch: only {frac_close:.4f} of elements close"

    print("KERNEL_OK")
</pallas_src>

<mosaic_0001>
module attributes {stable_mosaic.version = 11 : i64} {
  func.func @_fused_block_kernel(%arg0: memref<32x256xf32, #tpu.memory_space<vmem>>, %arg1: memref<768x256xbf16, #tpu.memory_space<vmem>>, %arg2: memref<768x256xbf16, #tpu.memory_space<vmem>>, %arg3: memref<1x256xf32, #tpu.memory_space<vmem>>, %arg4: memref<1x256xf32, #tpu.memory_space<vmem>>, %arg5: memref<1x256xf32, #tpu.memory_space<vmem>>, %arg6: memref<1x256xf32, #tpu.memory_space<vmem>>, %arg7: memref<32x256xf32, #tpu.memory_space<vmem>>, %arg8: memref<64x256xbf16, #tpu.memory_space<vmem>>) attributes {dimension_semantics = [], scalar_prefetch = 0 : i64, scratch_operands = 1 : i64, tpu.core_type = #tpu.core_type<tc>} {
    %0 = tpu.iota {dimensions = array<i32: 0>} : vector<32x1xi32>
    %c16_i32 = arith.constant 16 : i32
    %c0_i32 = arith.constant 0 : i32
    %1 = arith.cmpi eq, %c16_i32, %c0_i32 : i32
    %c1_i32 = arith.constant 1 : i32
    %2 = arith.select %1, %c1_i32, %c16_i32 : i32
    %3 = vector.broadcast %2 : i32 to vector<32x1xi32>
    %4 = arith.remsi %0, %3 : vector<32x1xi32>
    %c0_i32_0 = arith.constant 0 : i32
    %5 = vector.broadcast %c0_i32_0 : i32 to vector<32x1xi32>
    %6 = arith.cmpi ne, %4, %5 : vector<32x1xi32>
    %c0_i32_1 = arith.constant 0 : i32
    %7 = vector.broadcast %c0_i32_1 : i32 to vector<32x1xi32>
    %8 = arith.cmpi slt, %4, %7 : vector<32x1xi32>
    %c0_i32_2 = arith.constant 0 : i32
    %9 = arith.cmpi slt, %2, %c0_i32_2 : i32
    %10 = vector.broadcast %9 : i1 to vector<32x1xi1>
    %11 = vector.broadcast %10 : vector<32x1xi1> to vector<32x1xi1>
    %12 = arith.xori %8, %11 : vector<32x1xi1>
    %13 = arith.andi %12, %6 : vector<32x1xi1>
    %14 = vector.broadcast %2 : i32 to vector<32x1xi32>
    %15 = arith.addi %4, %14 : vector<32x1xi32>
    %16 = arith.select %13, %15, %4 : vector<32x1xi1>, vector<32x1xi32>
    %c1_i32_3 = arith.constant 1 : i32
    %17 = vector.broadcast %c1_i32_3 : i32 to vector<32x1xi32>
    %18 = arith.cmpi sge, %16, %17 : vector<32x1xi32>
    %19 = arith.extui %18 : vector<32x1xi1> to vector<32x1xi32>
    %20 = arith.sitofp %19 : vector<32x1xi32> to vector<32x1xf32>
    %21 = arith.truncf %20 : vector<32x1xf32> to vector<32x1xbf16>
    %c14_i32 = arith.constant 14 : i32
    %22 = vector.broadcast %c14_i32 : i32 to vector<32x1xi32>
    %23 = arith.cmpi sle, %16, %22 : vector<32x1xi32>
    %24 = arith.extui %23 : vector<32x1xi1> to vector<32x1xi32>
    %25 = arith.sitofp %24 : vector<32x1xi32> to vector<32x1xf32>
    %26 = arith.truncf %25 : vector<32x1xf32> to vector<32x1xbf16>
    %c0 = arith.constant 0 : index
    %c0_4 = arith.constant 0 : index
    %27 = vector.load %arg0[%c0, %c0_4] : memref<32x256xf32, #tpu.memory_space<vmem>>, vector<32x256xf32>
    %cst = arith.constant 0.000000e+00 : f32
    %28 = vector.broadcast %cst : f32 to vector<32x256xf32>
    %29 = arith.cmpf ole, %27, %28 : vector<32x256xf32>
    %cst_5 = arith.constant 2.000000e+00 : f32
    %30 = vector.broadcast %cst_5 : f32 to vector<32x256xf32>
    %31 = arith.addf %30, %27 : vector<32x256xf32>
    %32 = arith.mulf %31, %27 : vector<32x256xf32>
    %cst_6 = arith.constant 2.000000e+00 : f32
    %33 = vector.broadcast %cst_6 : f32 to vector<32x256xf32>
    %34 = arith.subf %33, %27 : vector<32x256xf32>
    %35 = arith.mulf %34, %27 : vector<32x256xf32>
    %36 = arith.select %29, %32, %35 : vector<32x256xi1>, vector<32x256xf32>
    %cst_7 = arith.constant 0.000000e+00 : f32
    %37 = vector.broadcast %cst_7 : f32 to vector<32x256xf32>
    %38 = arith.cmpf ogt, %36, %37 : vector<32x256xf32>
    %cst_8 = arith.constant 0.000000e+00 : f32
    %39 = vector.broadcast %cst_8 : f32 to vector<32x256xf32>
    %40 = arith.cmpf olt, %36, %39 : vector<32x256xf32>
    %cst_9 = arith.constant -1.000000e+00 : f32
    %cst_10 = arith.constant 0.000000e+00 : f32
    %41 = vector.broadcast %cst_9 : f32 to vector<32x256xf32>
    %42 = vector.broadcast %cst_10 : f32 to vector<32x256xf32>
    %43 = arith.select %40, %41, %42 : vector<32x256xi1>, vector<32x256xf32>
    %cst_11 = arith.constant 1.000000e+00 : f32
    %44 = vector.broadcast %cst_11 : f32 to vector<32x256xf32>
    %45 = arith.select %38, %44, %43 : vector<32x256xi1>, vector<32x256xf32>
    %cst_12 = arith.constant 0.000000e+00 : bf16
    %46 = vector.broadcast %cst_12 : bf16 to vector<16x256xbf16>
    %c0_13 = arith.constant 0 : index
    %c0_14 = arith.constant 0 : index
    %47 = vector.load %arg8[%c0_13, %c0_14] : memref<64x256xbf16, #tpu.memory_space<vmem>>, vector<16x256xbf16>
    tpu.vector_store %arg8[%c0_13, %c0_14], %46 {strides = array<i32>} : memref<64x256xbf16, #tpu.memory_space<vmem>>, vector<16x256xbf16>,
    %cst_15 = arith.constant 0.000000e+00 : bf16
    %48 = vector.broadcast %cst_15 : bf16 to vector<16x256xbf16>
    %c48 = arith.constant 48 : index
    %c0_16 = arith.constant 0 : index
    %49 = vector.load %arg8[%c48, %c0_16] : memref<64x256xbf16, #tpu.memory_space<vmem>>, vector<16x256xbf16>
    tpu.vector_store %arg8[%c48, %c0_16], %48 {strides = array<i32>} : memref<64x256xbf16, #tpu.memory_space<vmem>>, vector<16x256xbf16>,
    %50 = arith.truncf %45 : vector<32x256xf32> to vector<32x256xbf16>
    %c16 = arith.constant 16 : index
    %c0_17 = arith.constant 0 : index
    %51 = vector.load %arg8[%c16, %c0_17] : memref<64x256xbf16, #tpu.memory_space<vmem>>, vector<32x256xbf16>
    tpu.vector_store %arg8[%c16, %c0_17], %50 {strides = array<i32>} : memref<64x256xbf16, #tpu.memory_space<vmem>>, vector<32x256xbf16>,
    %cst_18 = arith.constant 0.000000e+00 : f32
    %52 = vector.broadcast %cst_18 : f32 to vector<32x256xf32>
    %c15 = arith.constant 15 : index
    %c0_19 = arith.constant 0 : index
    %53 = vector.load %arg8[%c15, %c0_19] : memref<64x256xbf16, #tpu.memory_space<vmem>>, vector<32x256xbf16>
    %54 = vector.broadcast %21 : vector<32x1xbf16> to vector<32x256xbf16>
    %55 = arith.mulf %53, %54 : vector<32x256xbf16>
    %c0_20 = arith.constant 0 : index
    %c0_21 = arith.constant 0 : index
    %56 = vector.load %arg1[%c0_20, %c0_21] : memref<768x256xbf16, #tpu.memory_space<vmem>>, vector<256x256xbf16>
    %cst_22 = arith.constant dense<0.000000e+00> : vector<32x256xf32>
    %57 = tpu.matmul %55, %56, %cst_22 {dimension_numbers = #tpu.dot_dimension_numbers<[1], [0], [0], [1], [0, 0, 1, 1], [], []>} : vector<32x256xbf16>, vector<256x256xbf16>, vector<32x256xf32> -> vector<32x256xf32>
    %58 = arith.addf %52, %57 : vector<32x256xf32>
    %c16_23 = arith.constant 16 : index
    %c0_24 = arith.constant 0 : index
    %59 = vector.load %arg8[%c16_23, %c0_24] : memref<64x256xbf16, #tpu.memory_space<vmem>>, vector<32x256xbf16>
    %c256 = arith.constant 256 : index
    %c0_25 = arith.constant 0 : index
    %60 = vector.load %arg1[%c256, %c0_25] : memref<768x256xbf16, #tpu.memory_space<vmem>>, vector<256x256xbf16>
    %cst_26 = arith.constant dense<0.000000e+00> : vector<32x256xf32>
    %61 = tpu.matmul %59, %60, %cst_26 {dimension_numbers = #tpu.dot_dimension_numbers<[1], [0], [0], [1], [0, 0, 1, 1], [], []>} : vector<32x256xbf16>, vector<256x256xbf16>, vector<32x256xf32> -> vector<32x256xf32>
    %62 = arith.addf %58, %61 : vector<32x256xf32>
    %c17 = arith.constant 17 : index
    %c0_27 = arith.constant 0 : index
    %63 = vector.load %arg8[%c17, %c0_27] : memref<64x256xbf16, #tpu.memory_space<vmem>>, vector<32x256xbf16>
    %64 = vector.broadcast %26 : vector<32x1xbf16> to vector<32x256xbf16>
    %65 = arith.mulf %63, %64 : vector<32x256xbf16>
    %c512 = arith.constant 512 : index
    %c0_28 = arith.constant 0 : index
    %66 = vector.load %arg1[%c512, %c0_28] : memref<768x256xbf16, #tpu.memory_space<vmem>>, vector<256x256xbf16>
    %cst_29 = arith.constant dense<0.000000e+00> : vector<32x256xf32>
    %67 = tpu.matmul %65, %66, %cst_29 {dimension_numbers = #tpu.dot_dimension_numbers<[1], [0], [0], [1], [0, 0, 1, 1], [], []>} : vector<32x256xbf16>, vector<256x256xbf16>, vector<32x256xf32> -> vector<32x256xf32>
    %68 = arith.addf %62, %67 : vector<32x256xf32>
    %c0_30 = arith.constant 0 : index
    %c0_31 = arith.constant 0 : index
    %69 = vector.load %arg3[%c0_30, %c0_31] : memref<1x256xf32, #tpu.memory_space<vmem>>, vector<1x256xf32>
    %c0_32 = arith.constant 0 : index
    %c0_33 = arith.constant 0 : index
    %70 = vector.load %arg4[%c0_32, %c0_33] : memref<1x256xf32, #tpu.memory_space<vmem>>, vector<1x256xf32>
    %cst_34 = arith.constant dense<0.000000e+00> : vector<256xf32>
    %71 = vector.multi_reduction <add>, %68, %cst_34 [0] : vector<32x256xf32> to vector<256xf32>
    %72 = vector.shape_cast %71 : vector<256xf32> to vector<1x256xf32>
    %c16_i32_35 = arith.constant 16 : i32
    %73 = tpu.dynamic_rotate %72 by %c16_i32_35 dim 1 : vector<1x256xf32>, i32 -> vector<1x256xf32>
    %74 = arith.addf %72, %73 : vector<1x256xf32>
    %c32_i32 = arith.constant 32 : i32
    %75 = tpu.dynamic_rotate %74 by %c32_i32 dim 1 : vector<1x256xf32>, i32 -> vector<1x256xf32>
    %76 = arith.addf %74, %75 : vector<1x256xf32>
    %c64_i32 = arith.constant 64 : i32
    %77 = tpu.dynamic_rotate %76 by %c64_i32 dim 1 : vector<1x256xf32>, i32 -> vector<1x256xf32>
    %78 = arith.addf %76, %77 : vector<1x256xf32>
    %c128_i32 = arith.constant 128 : i32
    %79 = tpu.dynamic_rotate %78 by %c128_i32 dim 1 : vector<1x256xf32>, i32 -> vector<1x256xf32>
    %80 = arith.addf %78, %79 : vector<1x256xf32>
    %cst_36 = arith.constant 0.001953125 : f32
    %81 = vector.broadcast %cst_36 : f32 to vector<1x256xf32>
    %82 = arith.mulf %80, %81 : vector<1x256xf32>
    %83 = arith.mulf %68, %68 : vector<32x256xf32>
    %cst_37 = arith.constant dense<0.000000e+00> : vector<256xf32>
    %84 = vector.multi_reduction <add>, %83, %cst_37 [0] : vector<32x256xf32> to vector<256xf32>
    %85 = vector.shape_cast %84 : vector<256xf32> to vector<1x256xf32>
    %c16_i32_38 = arith.constant 16 : i32
    %86 = tpu.dynamic_rotate %85 by %c16_i32_38 dim 1 : vector<1x256xf32>, i32 -> vector<1x256xf32>
    %87 = arith.addf %85, %86 : vector<1x256xf32>
    %c32_i32_39 = arith.constant 32 : i32
    %88 = tpu.dynamic_rotate %87 by %c32_i32_39 dim 1 : vector<1x256xf32>, i32 -> vector<1x256xf32>
    %89 = arith.addf %87, %88 : vector<1x256xf32>
    %c64_i32_40 = arith.constant 64 : i32
    %90 = tpu.dynamic_rotate %89 by %c64_i32_40 dim 1 : vector<1x256xf32>, i32 -> vector<1x256xf32>
    %91 = arith.addf %89, %90 : vector<1x256xf32>
    %c128_i32_41 = arith.constant 128 : i32
    %92 = tpu.dynamic_rotate %91 by %c128_i32_41 dim 1 : vector<1x256xf32>, i32 -> vector<1x256xf32>
    %93 = arith.addf %91, %92 : vector<1x256xf32>
    %cst_42 = arith.constant 0.001953125 : f32
    %94 = vector.broadcast %cst_42 : f32 to vector<1x256xf32>
    %95 = arith.mulf %93, %94 : vector<1x256xf32>
    %96 = arith.mulf %82, %82 : vector<1x256xf32>
    %97 = arith.subf %95, %96 : vector<1x256xf32>
    %cst_43 = arith.constant 9.99999974E-6 : f32
    %98 = vector.broadcast %cst_43 : f32 to vector<1x256xf32>
    %99 = arith.addf %97, %98 : vector<1x256xf32>
    %100 = math.rsqrt %99 : vector<1x256xf32>
    %101 = arith.mulf %100, %69 : vector<1x256xf32>
    %102 = vector.broadcast %82 : vector<1x256xf32> to vector<32x256xf32>
    %103 = arith.subf %68, %102 : vector<32x256xf32>
    %104 = vector.broadcast %101 : vector<1x256xf32> to vector<32x256xf32>
    %105 = arith.mulf %103, %104 : vector<32x256xf32>
    %106 = vector.broadcast %70 : vector<1x256xf32> to vector<32x256xf32>
    %107 = arith.addf %105, %106 : vector<32x256xf32>
    %cst_44 = arith.constant -1.000000e+00 : f32
    %cst_45 = arith.constant 1.000000e+00 : f32
    %108 = vector.broadcast %cst_44 : f32 to vector<32x256xf32>
    %109 = arith.maximumf %108, %107 : vector<32x256xf32>
    %110 = vector.broadcast %cst_45 : f32 to vector<32x256xf32>
    %111 = arith.minimumf %110, %109 : vector<32x256xf32>
    %cst_46 = arith.constant 0.000000e+00 : f32
    %112 = vector.broadcast %cst_46 : f32 to vector<32x256xf32>
    %113 = arith.cmpf ogt, %111, %112 : vector<32x256xf32>
    %cst_47 = arith.constant 0.000000e+00 : f32
    %114 = vector.broadcast %cst_47 : f32 to vector<32x256xf32>
    %115 = arith.cmpf olt, %111, %114 : vector<32x256xf32>
    %cst_48 = arith.constant -1.000000e+00 : f32
    %cst_49 = arith.constant 0.000000e+00 : f32
    %116 = vector.broadcast %cst_48 : f32 to vector<32x256xf32>
    %117 = vector.broadcast %cst_49 : f32 to vector<32x256xf32>
    %118 = arith.select %115, %116, %117 : vector<32x256xi1>, vector<32x256xf32>
    %cst_50 = arith.constant 1.000000e+00 : f32
    %119 = vector.broadcast %cst_50 : f32 to vector<32x256xf32>
    %120 = arith.select %113, %119, %118 : vector<32x256xi1>, vector<32x256xf32>
    %121 = arith.truncf %120 : vector<32x256xf32> to vector<32x256xbf16>
    %c16_51 = arith.constant 16 : index
    %c0_52 = arith.constant 0 : index
    %122 = vector.load %arg8[%c16_51, %c0_52] : memref<64x256xbf16, #tpu.memory_space<vmem>>, vector<32x256xbf16>
    tpu.vector_store %arg8[%c16_51, %c0_52], %121 {strides = array<i32>} : memref<64x256xbf16, #tpu.memory_space<vmem>>, vector<32x256xbf16>,
    %cst_53 = arith.constant 0.000000e+00 : f32
    %123 = vector.broadcast %cst_53 : f32 to vector<32x256xf32>
    %c15_54 = arith.constant 15 : index
    %c0_55 = arith.constant 0 : index
    %124 = vector.load %arg8[%c15_54, %c0_55] : memref<64x256xbf16, #tpu.memory_space<vmem>>, vector<32x256xbf16>
    %125 = vector.broadcast %21 : vector<32x1xbf16> to vector<32x256xbf16>
    %126 = arith.mulf %124, %125 : vector<32x256xbf16>
    %c0_56 = arith.constant 0 : index
    %c0_57 = arith.constant 0 : index
    %127 = vector.load %arg2[%c0_56, %c0_57] : memref<768x256xbf16, #tpu.memory_space<vmem>>, vector<256x256xbf16>
    %cst_58 = arith.constant dense<0.000000e+00> : vector<32x256xf32>
    %128 = tpu.matmul %126, %127, %cst_58 {dimension_numbers = #tpu.dot_dimension_numbers<[1], [0], [0], [1], [0, 0, 1, 1], [], []>} : vector<32x256xbf16>, vector<256x256xbf16>, vector<32x256xf32> -> vector<32x256xf32>
    %129 = arith.addf %123, %128 : vector<32x256xf32>
    %c16_59 = arith.constant 16 : index
    %c0_60 = arith.constant 0 : index
    %130 = vector.load %arg8[%c16_59, %c0_60] : memref<64x256xbf16, #tpu.memory_space<vmem>>, vector<32x256xbf16>
    %c256_61 = arith.constant 256 : index
    %c0_62 = arith.constant 0 : index
    %131 = vector.load %arg2[%c256_61, %c0_62] : memref<768x256xbf16, #tpu.memory_space<vmem>>, vector<256x256xbf16>
    %cst_63 = arith.constant dense<0.000000e+00> : vector<32x256xf32>
    %132 = tpu.matmul %130, %131, %cst_63 {dimension_numbers = #tpu.dot_dimension_numbers<[1], [0], [0], [1], [0, 0, 1, 1], [], []>} : vector<32x256xbf16>, vector<256x256xbf16>, vector<32x256xf32> -> vector<32x256xf32>
    %133 = arith.addf %129, %132 : vector<32x256xf32>
    %c17_64 = arith.constant 17 : index
    %c0_65 = arith.constant 0 : index
    %134 = vector.load %arg8[%c17_64, %c0_65] : memref<64x256xbf16, #tpu.memory_space<vmem>>, vector<32x256xbf16>
    %135 = vector.broadcast %26 : vector<32x1xbf16> to vector<32x256xbf16>
    %136 = arith.mulf %134, %135 : vector<32x256xbf16>
    %c512_66 = arith.constant 512 : index
    %c0_67 = arith.constant 0 : index
    %137 = vector.load %arg2[%c512_66, %c0_67] : memref<768x256xbf16, #tpu.memory_space<vmem>>, vector<256x256xbf16>
    %cst_68 = arith.constant dense<0.000000e+00> : vector<32x256xf32>
    %138 = tpu.matmul %136, %137, %cst_68 {dimension_numbers = #tpu.dot_dimension_numbers<[1], [0], [0], [1], [0, 0, 1, 1], [], []>} : vector<32x256xbf16>, vector<256x256xbf16>, vector<32x256xf32> -> vector<32x256xf32>
    %139 = arith.addf %133, %138 : vector<32x256xf32>
    %c0_69 = arith.constant 0 : index
    %c0_70 = arith.constant 0 : index
    %140 = vector.load %arg5[%c0_69, %c0_70] : memref<1x256xf32, #tpu.memory_space<vmem>>, vector<1x256xf32>
    %c0_71 = arith.constant 0 : index
    %c0_72 = arith.constant 0 : index
    %141 = vector.load %arg6[%c0_71, %c0_72] : memref<1x256xf32, #tpu.memory_space<vmem>>, vector<1x256xf32>
    %cst_73 = arith.constant dense<0.000000e+00> : vector<256xf32>
    %142 = vector.multi_reduction <add>, %139, %cst_73 [0] : vector<32x256xf32> to vector<256xf32>
    %143 = vector.shape_cast %142 : vector<256xf32> to vector<1x256xf32>
    %c16_i32_74 = arith.constant 16 : i32
    %144 = tpu.dynamic_rotate %143 by %c16_i32_74 dim 1 : vector<1x256xf32>, i32 -> vector<1x256xf32>
    %145 = arith.addf %143, %144 : vector<1x256xf32>
    %c32_i32_75 = arith.constant 32 : i32
    %146 = tpu.dynamic_rotate %145 by %c32_i32_75 dim 1 : vector<1x256xf32>, i32 -> vector<1x256xf32>
    %147 = arith.addf %145, %146 : vector<1x256xf32>
    %c64_i32_76 = arith.constant 64 : i32
    %148 = tpu.dynamic_rotate %147 by %c64_i32_76 dim 1 : vector<1x256xf32>, i32 -> vector<1x256xf32>
    %149 = arith.addf %147, %148 : vector<1x256xf32>
    %c128_i32_77 = arith.constant 128 : i32
    %150 = tpu.dynamic_rotate %149 by %c128_i32_77 dim 1 : vector<1x256xf32>, i32 -> vector<1x256xf32>
    %151 = arith.addf %149, %150 : vector<1x256xf32>
    %cst_78 = arith.constant 0.001953125 : f32
    %152 = vector.broadcast %cst_78 : f32 to vector<1x256xf32>
    %153 = arith.mulf %151, %152 : vector<1x256xf32>
    %154 = arith.mulf %139, %139 : vector<32x256xf32>
    %cst_79 = arith.constant dense<0.000000e+00> : vector<256xf32>
    %155 = vector.multi_reduction <add>, %154, %cst_79 [0] : vector<32x256xf32> to vector<256xf32>
    %156 = vector.shape_cast %155 : vector<256xf32> to vector<1x256xf32>
    %c16_i32_80 = arith.constant 16 : i32
    %157 = tpu.dynamic_rotate %156 by %c16_i32_80 dim 1 : vector<1x256xf32>, i32 -> vector<1x256xf32>
    %158 = arith.addf %156, %157 : vector<1x256xf32>
    %c32_i32_81 = arith.constant 32 : i32
    %159 = tpu.dynamic_rotate %158 by %c32_i32_81 dim 1 : vector<1x256xf32>, i32 -> vector<1x256xf32>
    %160 = arith.addf %158, %159 : vector<1x256xf32>
    %c64_i32_82 = arith.constant 64 : i32
    %161 = tpu.dynamic_rotate %160 by %c64_i32_82 dim 1 : vector<1x256xf32>, i32 -> vector<1x256xf32>
    %162 = arith.addf %160, %161 : vector<1x256xf32>
    %c128_i32_83 = arith.constant 128 : i32
    %163 = tpu.dynamic_rotate %162 by %c128_i32_83 dim 1 : vector<1x256xf32>, i32 -> vector<1x256xf32>
    %164 = arith.addf %162, %163 : vector<1x256xf32>
    %cst_84 = arith.constant 0.001953125 : f32
    %165 = vector.broadcast %cst_84 : f32 to vector<1x256xf32>
    %166 = arith.mulf %164, %165 : vector<1x256xf32>
    %167 = arith.mulf %153, %153 : vector<1x256xf32>
    %168 = arith.subf %166, %167 : vector<1x256xf32>
    %cst_85 = arith.constant 9.99999974E-6 : f32
    %169 = vector.broadcast %cst_85 : f32 to vector<1x256xf32>
    %170 = arith.addf %168, %169 : vector<1x256xf32>
    %171 = math.rsqrt %170 : vector<1x256xf32>
    %172 = arith.mulf %171, %140 : vector<1x256xf32>
    %173 = vector.broadcast %153 : vector<1x256xf32> to vector<32x256xf32>
    %174 = arith.subf %139, %173 : vector<32x256xf32>
    %175 = vector.broadcast %172 : vector<1x256xf32> to vector<32x256xf32>
    %176 = arith.mulf %174, %175 : vector<32x256xf32>
    %177 = vector.broadcast %141 : vector<1x256xf32> to vector<32x256xf32>
    %178 = arith.addf %176, %177 : vector<32x256xf32>
    %cst_86 = arith.constant 0.000000e+00 : f32
    %179 = vector.broadcast %cst_86 : f32 to vector<32x256xf32>
    %180 = arith.cmpf ole, %27, %179 : vector<32x256xf32>
    %cst_87 = arith.constant 2.000000e+00 : f32
    %181 = vector.broadcast %cst_87 : f32 to vector<32x256xf32>
    %182 = arith.addf %181, %27 : vector<32x256xf32>
    %183 = arith.mulf %182, %27 : vector<32x256xf32>
    %cst_88 = arith.constant 2.000000e+00 : f32
    %184 = vector.broadcast %cst_88 : f32 to vector<32x256xf32>
    %185 = arith.subf %184, %27 : vector<32x256xf32>
    %186 = arith.mulf %185, %27 : vector<32x256xf32>
    %187 = arith.select %180, %183, %186 : vector<32x256xi1>, vector<32x256xf32>
    %188 = arith.addf %178, %187 : vector<32x256xf32>
    %cst_89 = arith.constant -1.000000e+00 : f32
    %cst_90 = arith.constant 1.000000e+00 : f32
    %189 = vector.broadcast %cst_89 : f32 to vector<32x256xf32>
    %190 = arith.maximumf %189, %188 : vector<32x256xf32>
    %191 = vector.broadcast %cst_90 : f32 to vector<32x256xf32>
    %192 = arith.minimumf %191, %190 : vector<32x256xf32>
    %c0_91 = arith.constant 0 : index
    %c0_92 = arith.constant 0 : index
    %193 = vector.load %arg7[%c0_91, %c0_92] : memref<32x256xf32, #tpu.memory_space<vmem>>, vector<32x256xf32>
    tpu.vector_store %arg7[%c0_91, %c0_92], %192 {strides = array<i32>} : memref<32x256xf32, #tpu.memory_space<vmem>>, vector<32x256xf32>,
    return
  }
}

</mosaic_0001>

<llo_original>
// kernel: resnet_block_b_forward.1
$region0: #{resnet_block_b_forward.1}
  #allocation0 [shape = 'u32[]', space=smem, size = 0x4, offset = 0x4, fixed_abs, tag = 'smem constant byte address 0x4 - core index']
  #allocation1 [shape = 'u32[144,128]{1,0:T(1,128)}', space=vmem, size = 0x12000, scoped, tag = 'internal scratch']
  #allocation2 [shape = 'bf16[64,256]{1,0:T(16,128)(2,1)}', space=vmem, size = 0x8000, scoped, tag = 'scratch operand']
  %s0 = inlined_call_operand.vmem [shape: f32[32,256], index: 0, kind: input, shape index: {}]
  %s1 = inlined_call_operand.vmem [shape: bf16[768,256], index: 1, kind: input, shape index: {}]
  %s2 = inlined_call_operand.vmem [shape: bf16[768,256], index: 2, kind: input, shape index: {}]
  %s3 = inlined_call_operand.vmem [shape: f32[1,256], index: 3, kind: input, shape index: {}]
  %s4 = inlined_call_operand.vmem [shape: f32[1,256], index: 4, kind: input, shape index: {}]
  %s5 = inlined_call_operand.vmem [shape: f32[1,256], index: 5, kind: input, shape index: {}]
  %s6 = inlined_call_operand.vmem [shape: f32[1,256], index: 6, kind: input, shape index: {}]
  %s7 = inlined_call_operand.vmem [shape: f32[32,256], index: 7, kind: output, shape index: {}]
  %s8 = sld [smem:[#allocation0]]
  $region38: #{resnet_block_b_forward.1} parent=0
    _
  %s10 = ssub.s32 1, %s8
  %s11 = scalar_select 0, %s10, %s8
  // Predicated region
  $region2: #{resnet_block_b_forward.1} parent=0 // pred_check
    _
  $region3: #{resnet_block_b_forward.1} parent=0 // pred_check_branch
    %13 = sbr.rel (0) target = $region5
  $region4: #{resnet_block_b_forward.1} parent=0 // pred_region
    _
  $region5: #{resnet_block_b_forward.1} parent=0 // pred_fallthru
    _
  // Predicated region
  $region6: #{resnet_block_b_forward.1} parent=0 // pred_check
    _
  $region7: #{resnet_block_b_forward.1} parent=0 // pred_check_branch
    %15 = sbr.rel (0) target = $region9
  $region8: #{resnet_block_b_forward.1} parent=0 // pred_region
    _
  $region9: #{resnet_block_b_forward.1} parent=0 // pred_fallthru
    _
  // Predicated region
  $region10: #{resnet_block_b_forward.1} parent=0 // pred_check
    _
  $region11: #{resnet_block_b_forward.1} parent=0 // pred_check_branch
    %17 = sbr.rel (0) target = $region13
  $region12: #{resnet_block_b_forward.1} parent=0 // pred_region
    _
  $region13: #{resnet_block_b_forward.1} parent=0 // pred_fallthru
    _
  // Predicated region
  $region14: #{resnet_block_b_forward.1} parent=0 // pred_check
    _
  $region15: #{resnet_block_b_forward.1} parent=0 // pred_check_branch
    %19 = sbr.rel (0) target = $region17
  $region16: #{resnet_block_b_forward.1} parent=0 // pred_region
    _
  $region17: #{resnet_block_b_forward.1} parent=0 // pred_fallthru
    _
  // Predicated region
  $region18: #{resnet_block_b_forward.1} parent=0 // pred_check
    _
  $region19: #{resnet_block_b_forward.1} parent=0 // pred_check_branch
    %21 = sbr.rel (0) target = $region21
  $region20: #{resnet_block_b_forward.1} parent=0 // pred_region
    _
  $region21: #{resnet_block_b_forward.1} parent=0 // pred_fallthru
    _
  // Predicated region
  $region22: #{resnet_block_b_forward.1} parent=0 // pred_check
    _
  $region23: #{resnet_block_b_forward.1} parent=0 // pred_check_branch
    %23 = sbr.rel (0) target = $region25
  $region24: #{resnet_block_b_forward.1} parent=0 // pred_region
    _
  $region25: #{resnet_block_b_forward.1} parent=0 // pred_fallthru
    _
  // Predicated region
  $region26: #{resnet_block_b_forward.1} parent=0 // pred_check
    _
  $region27: #{resnet_block_b_forward.1} parent=0 // pred_check_branch
    %25 = sbr.rel (0) target = $region29
  $region28: #{resnet_block_b_forward.1} parent=0 // pred_region
    _
  $region29: #{resnet_block_b_forward.1} parent=0 // pred_fallthru
    _
  %v27 = vlaneseq
  %v28 = vshrl.u32 %v27, 7
  %v29 = vadd.s32 %v28, 8
  %v30 = vadd.s32 %v28, 16
  %v31 = vadd.s32 %v28, 24
  %vm32 = vcmp.lt.s32.totalorder %v28, 0
  %v33 = vsub.s32 0, %v28
  %v34 = vsel %vm32, %v33, %v28
  %v35 = vshrl.u32 %v34, 4
  %v36 = vand.u32 %v34, 15
  %v37 = vsub.s32 0, %v36
  %v38 = vsel %vm32, %v37, %v36
  %vm39 = vcmp.lt.s32.totalorder %v29, 0
  %v40 = vsub.s32 0, %v29
  %v41 = vsel %vm39, %v40, %v29
  %v42 = vshrl.u32 %v41, 4
  %v43 = vand.u32 %v41, 15
  %v44 = vsub.s32 0, %v43
  %v45 = vsel %vm39, %v44, %v43
  %vm46 = vcmp.lt.s32.totalorder %v30, 0
  %v47 = vsub.s32 0, %v30
  %v48 = vsel %vm46, %v47, %v30
  %v49 = vshrl.u32 %v48, 4
  %v50 = vand.u32 %v48, 15
  %v51 = vsub.s32 0, %v50
  %v52 = vsel %vm46, %v51, %v50
  %vm53 = vcmp.lt.s32.totalorder %v31, 0
  %v54 = vsub.s32 0, %v31
  %v55 = vsel %vm53, %v54, %v31
  %v56 = vshrl.u32 %v55, 4
  %v57 = vand.u32 %v55, 15
  %v58 = vsub.s32 0, %v57
  %v59 = vsel %vm53, %v58, %v57
  %vm60 = vcmp.ne.s32.totalorder %v38, 0
  %vm61 = vcmp.ne.s32.totalorder %v45, 0
  %vm62 = vcmp.ne.s32.totalorder %v52, 0
  %vm63 = vcmp.ne.s32.totalorder %v59, 0
  %vm64 = vcmp.lt.s32.totalorder %v38, 0
  %vm65 = vcmp.lt.s32.totalorder %v45, 0
  %vm66 = vcmp.lt.s32.totalorder %v52, 0
  %vm67 = vcmp.lt.s32.totalorder %v59, 0
  %vm68 = vmand %vm64, %vm60
  %vm69 = vmand %vm65, %vm61
  %vm70 = vmand %vm66, %vm62
  %vm71 = vmand %vm67, %vm63
  %v72 = vadd.s32 %v38, 16
  %v73 = vadd.s32 %v45, 16
  %v74 = vadd.s32 %v52, 16
  %v75 = vadd.s32 %v59, 16
  %v76 = vsel %vm68, %v72, %v38
  %v77 = vsel %vm69, %v73, %v45
  %v78 = vsel %vm70, %v74, %v52
  %v79 = vsel %vm71, %v75, %v59
  %vm80 = vcmp.ge.s32.totalorder %v76, 1
  %vm81 = vcmp.ge.s32.totalorder %v77, 1
  %vm82 = vcmp.ge.s32.totalorder %v78, 1
  %vm83 = vcmp.ge.s32.totalorder %v79, 1
  %v84 = vsel %vm80, 1, 0
  %v85 = vsel %vm81, 1, 0
  %v86 = vsel %vm82, 1, 0
  %v87 = vsel %vm83, 1, 0
  %v88 = vcvt.s32.f32 %v84
  %v89 = vcvt.s32.f32 %v85
  %v90 = vcvt.s32.f32 %v86
  %v91 = vcvt.s32.f32 %v87
  %v92 = vpack.c.bf16 %v89, %v88
  %v93 = vpack.c.bf16 %v91, %v90
  %vm94 = vcmp.le.s32.totalorder %v76, 14
  %vm95 = vcmp.le.s32.totalorder %v77, 14
  %vm96 = vcmp.le.s32.totalorder %v78, 14
  %vm97 = vcmp.le.s32.totalorder %v79, 14
  %v98 = vsel %vm94, 1, 0
  %v99 = vsel %vm95, 1, 0
  %v100 = vsel %vm96, 1, 0
  %v101 = vsel %vm97, 1, 0
  %v102 = vcvt.s32.f32 %v98
  %v103 = vcvt.s32.f32 %v99
  %v104 = vcvt.s32.f32 %v100
  %v105 = vcvt.s32.f32 %v101
  %v106 = vpack.c.bf16 %v103, %v102
  %v107 = vpack.c.bf16 %v105, %v104
  %v108 = vld [vmem:[%s0] sm:$0xff]
  %v109 = vld [vmem:[%s0 + $0x8] sm:$0xff]
  %v110 = vld [vmem:[%s0 + $0x10] sm:$0xff]
  %v111 = vld [vmem:[%s0 + $0x18] sm:$0xff]
  %v112 = vld [vmem:[%s0 + $0x20] sm:$0xff]
  %v113 = vld [vmem:[%s0 + $0x28] sm:$0xff]
  %v114 = vld [vmem:[%s0 + $0x30] sm:$0xff]
  %v115 = vld [vmem:[%s0 + $0x38] sm:$0xff]
  %vm116 = vcmp.le.f32.partialorder %v108, 0.0
  %vm117 = vcmp.le.f32.partialorder %v109, 0.0
  %vm118 = vcmp.le.f32.partialorder %v110, 0.0
  %vm119 = vcmp.le.f32.partialorder %v111, 0.0
  %vm120 = vcmp.le.f32.partialorder %v112, 0.0
  %vm121 = vcmp.le.f32.partialorder %v113, 0.0
  %vm122 = vcmp.le.f32.partialorder %v114, 0.0
  %vm123 = vcmp.le.f32.partialorder %v115, 0.0
  %v124 = vadd.f32 %v108, 2.0
  %v125 = vadd.f32 %v109, 2.0
  %v126 = vadd.f32 %v110, 2.0
  %v127 = vadd.f32 %v111, 2.0
  %v128 = vadd.f32 %v112, 2.0
  %v129 = vadd.f32 %v113, 2.0
  %v130 = vadd.f32 %v114, 2.0
  %v131 = vadd.f32 %v115, 2.0
  %v132 = vmul.f32 %v124, %v108
  %v133 = vmul.f32 %v125, %v109
  %v134 = vmul.f32 %v126, %v110
  %v135 = vmul.f32 %v127, %v111
  %v136 = vmul.f32 %v128, %v112
  %v137 = vmul.f32 %v129, %v113
  %v138 = vmul.f32 %v130, %v114
  %v139 = vmul.f32 %v131, %v115
  %v140 = vsub.f32 2.0, %v108
  %v141 = vsub.f32 2.0, %v109
  %v142 = vsub.f32 2.0, %v110
  %v143 = vsub.f32 2.0, %v111
  %v144 = vsub.f32 2.0, %v112
  %v145 = vsub.f32 2.0, %v113
  %v146 = vsub.f32 2.0, %v114
  %v147 = vsub.f32 2.0, %v115
  %v148 = vmul.f32 %v140, %v108
  %v149 = vmul.f32 %v141, %v109
  %v150 = vmul.f32 %v142, %v110
  %v151 = vmul.f32 %v143, %v111
  %v152 = vmul.f32 %v144, %v112
  %v153 = vmul.f32 %v145, %v113
  %v154 = vmul.f32 %v146, %v114
  %v155 = vmul.f32 %v147, %v115
  %v156 = vsel %vm116, %v132, %v148
  %v157 = vsel %vm117, %v133, %v149
  %v158 = vsel %vm118, %v134, %v150
  %v159 = vsel %vm119, %v135, %v151
  %v160 = vsel %vm120, %v136, %v152
  %v161 = vsel %vm121, %v137, %v153
  %v162 = vsel %vm122, %v138, %v154
  %v163 = vsel %vm123, %v139, %v155
  %vm164 = vcmp.gt.f32.partialorder %v156, 0.0
  %vm165 = vcmp.gt.f32.partialorder %v157, 0.0
  %vm166 = vcmp.gt.f32.partialorder %v158, 0.0
  %vm167 = vcmp.gt.f32.partialorder %v159, 0.0
  %vm168 = vcmp.gt.f32.partialorder %v160, 0.0
  %vm169 = vcmp.gt.f32.partialorder %v161, 0.0
  %vm170 = vcmp.gt.f32.partialorder %v162, 0.0
  %vm171 = vcmp.gt.f32.partialorder %v163, 0.0
  %vm172 = vcmp.lt.f32.partialorder %v156, 0.0
  %vm173 = vcmp.lt.f32.partialorder %v157, 0.0
  %vm174 = vcmp.lt.f32.partialorder %v158, 0.0
  %vm175 = vcmp.lt.f32.partialorder %v159, 0.0
  %vm176 = vcmp.lt.f32.partialorder %v160, 0.0
  %vm177 = vcmp.lt.f32.partialorder %v161, 0.0
  %vm178 = vcmp.lt.f32.partialorder %v162, 0.0
  %vm179 = vcmp.lt.f32.partialorder %v163, 0.0
  %v180 = vsel %vm172, -1.0, 0.0
  %v181 = vsel %vm173, -1.0, 0.0
  %v182 = vsel %vm174, -1.0, 0.0
  %v183 = vsel %vm175, -1.0, 0.0
  %v184 = vsel %vm176, -1.0, 0.0
  %v185 = vsel %vm177, -1.0, 0.0
  %v186 = vsel %vm178, -1.0, 0.0
  %v187 = vsel %vm179, -1.0, 0.0
  %v188 = vsel %vm164, 1.0, %v180
  %v189 = vsel %vm165, 1.0, %v181
  %v190 = vsel %vm166, 1.0, %v182
  %v191 = vsel %vm167, 1.0, %v183
  %v192 = vsel %vm168, 1.0, %v184
  %v193 = vsel %vm169, 1.0, %v185
  %v194 = vsel %vm170, 1.0, %v186
  %v195 = vsel %vm171, 1.0, %v187
  %196 = vst [vmem:[#allocation2] sm:$0xff] 0
  %197 = vst [vmem:[#allocation2 + $0x8] sm:$0xff] 0
  %198 = vst [vmem:[#allocation2 + $0x30] sm:$0xff] 0
  %199 = vst [vmem:[#allocation2 + $0x38] sm:$0xff] 0
  %v200 = vpack.c.bf16 %v190, %v188
  %v201 = vpack.c.bf16 %v191, %v189
  %v202 = vpack.c.bf16 %v194, %v192
  %v203 = vpack.c.bf16 %v195, %v193
  %204 = vst [vmem:[#allocation2 + $0x10] sm:$0xff] %v200
  %205 = vst [vmem:[#allocation2 + $0x18] sm:$0xff] %v201
  %206 = vst [vmem:[#allocation2 + $0x20] sm:$0xff] %v202
  %207 = vst [vmem:[#allocation2 + $0x28] sm:$0xff] %v203
  %v208 = vld [vmem:[#allocation2] sm:$0x80]
  %v209 = vld [vmem:[#allocation2 + $0x8] sm:$0x80]
  %v210 = vld [vmem:[#allocation2 + $0x10] sm:$0xff]
  %v211 = vld [vmem:[#allocation2 + $0x18] sm:$0xff]
  %v212 = vld [vmem:[#allocation2 + $0x20] sm:$0xff]
  %v213 = vld [vmem:[#allocation2 + $0x28] sm:$0xff]
  %vm214 = vsmask.f32 7424
  %v216 = vshll.u32 %v92, 16
  %v218 = vrot.slane %v216, 1
  %v219 = vshrl.u32 %v92, 16
  %v221 = vor.u32 %v219, %v218
  %v223 = vshll.u32 %v93, 16
  %v225 = vrot.slane %v223, 1
  %v226 = vsel %vm214, %v221, %v225
  %v227 = vshrl.u32 %v93, 16
  %v229 = vor.u32 %v227, %v225
  %v233 = vmul.bf16 %v208, %v218
  %v234 = vmul.bf16 %v209, %v218
  %v235 = vmul.bf16 %v210, %v226
  %v236 = vmul.bf16 %v211, %v226
  %v237 = vmul.bf16 %v212, %v229
  %v238 = vmul.bf16 %v213, %v229
  %v239 = vld [vmem:[%s1] sm:$0xff]
  %v240 = vld [vmem:[%s1 + $0x8] sm:$0xff]
  %v241 = vld [vmem:[%s1 + $0x10] sm:$0xff]
  %v242 = vld [vmem:[%s1 + $0x18] sm:$0xff]
  %v243 = vld [vmem:[%s1 + $0x20] sm:$0xff]
  %v244 = vld [vmem:[%s1 + $0x28] sm:$0xff]
  %v245 = vld [vmem:[%s1 + $0x30] sm:$0xff]
  %v246 = vld [vmem:[%s1 + $0x38] sm:$0xff]
  %v247 = vld [vmem:[%s1 + $0x40] sm:$0xff]
  %v248 = vld [vmem:[%s1 + $0x48] sm:$0xff]
  %v249 = vld [vmem:[%s1 + $0x50] sm:$0xff]
  %v250 = vld [vmem:[%s1 + $0x58] sm:$0xff]
  %v251 = vld [vmem:[%s1 + $0x60] sm:$0xff]
  %v252 = vld [vmem:[%s1 + $0x68] sm:$0xff]
  %v253 = vld [vmem:[%s1 + $0x70] sm:$0xff]
  %v254 = vld [vmem:[%s1 + $0x78] sm:$0xff]
  %v255 = vld [vmem:[%s1 + $0x80] sm:$0xff]
  %v256 = vld [vmem:[%s1 + $0x88] sm:$0xff]
  %v257 = vld [vmem:[%s1 + $0x90] sm:$0xff]
  %v258 = vld [vmem:[%s1 + $0x98] sm:$0xff]
  %v259 = vld [vmem:[%s1 + $0xa0] sm:$0xff]
  %v260 = vld [vmem:[%s1 + $0xa8] sm:$0xff]
  %v261 = vld [vmem:[%s1 + $0xb0] sm:$0xff]
  %v262 = vld [vmem:[%s1 + $0xb8] sm:$0xff]
  %v263 = vld [vmem:[%s1 + $0xc0] sm:$0xff]
  %v264 = vld [vmem:[%s1 + $0xc8] sm:$0xff]
  %v265 = vld [vmem:[%s1 + $0xd0] sm:$0xff]
  %v266 = vld [vmem:[%s1 + $0xd8] sm:$0xff]
  %v267 = vld [vmem:[%s1 + $0xe0] sm:$0xff]
  %v268 = vld [vmem:[%s1 + $0xe8] sm:$0xff]
  %v269 = vld [vmem:[%s1 + $0xf0] sm:$0xff]
  %v270 = vld [vmem:[%s1 + $0xf8] sm:$0xff]
  %v271 = vld [vmem:[%s1 + $0x100] sm:$0xff]
  %v272 = vld [vmem:[%s1 + $0x108] sm:$0xff]
  %v273 = vld [vmem:[%s1 + $0x110] sm:$0xff]
  %v274 = vld [vmem:[%s1 + $0x118] sm:$0xff]
  %v275 = vld [vmem:[%s1 + $0x120] sm:$0xff]
  %v276 = vld [vmem:[%s1 + $0x128] sm:$0xff]
  %v277 = vld [vmem:[%s1 + $0x130] sm:$0xff]
  %v278 = vld [vmem:[%s1 + $0x138] sm:$0xff]
  %v279 = vld [vmem:[%s1 + $0x140] sm:$0xff]
  %v280 = vld [vmem:[%s1 + $0x148] sm:$0xff]
  %v281 = vld [vmem:[%s1 + $0x150] sm:$0xff]
  %v282 = vld [vmem:[%s1 + $0x158] sm:$0xff]
  %v283 = vld [vmem:[%s1 + $0x160] sm:$0xff]
  %v284 = vld [vmem:[%s1 + $0x168] sm:$0xff]
  %v285 = vld [vmem:[%s1 + $0x170] sm:$0xff]
  %v286 = vld [vmem:[%s1 + $0x178] sm:$0xff]
  %v287 = vld [vmem:[%s1 + $0x180] sm:$0xff]
  %v288 = vld [vmem:[%s1 + $0x188] sm:$0xff]
  %v289 = vld [vmem:[%s1 + $0x190] sm:$0xff]
  %v290 = vld [vmem:[%s1 + $0x198] sm:$0xff]
  %v291 = vld [vmem:[%s1 + $0x1a0] sm:$0xff]
  %v292 = vld [vmem:[%s1 + $0x1a8] sm:$0xff]
  %v293 = vld [vmem:[%s1 + $0x1b0] sm:$0xff]
  %v294 = vld [vmem:[%s1 + $0x1b8] sm:$0xff]
  %v295 = vld [vmem:[%s1 + $0x1c0] sm:$0xff]
  %v296 = vld [vmem:[%s1 + $0x1c8] sm:$0xff]
  %v297 = vld [vmem:[%s1 + $0x1d0] sm:$0xff]
  %v298 = vld [vmem:[%s1 + $0x1d8] sm:$0xff]
  %v299 = vld [vmem:[%s1 + $0x1e0] sm:$0xff]
  %v300 = vld [vmem:[%s1 + $0x1e8] sm:$0xff]
  %v301 = vld [vmem:[%s1 + $0x1f0] sm:$0xff]
  %v302 = vld [vmem:[%s1 + $0x1f8] sm:$0xff]
  %v335 = vunpack.c.l.b16 %v271
  %v336 = vunpack.c.h.b16 %v271
  %v337 = vunpack.c.l.b16 %v272
  %v338 = vunpack.c.h.b16 %v272
  %v339 = vunpack.c.l.b16 %v273
  %v340 = vunpack.c.h.b16 %v273
  %v341 = vunpack.c.l.b16 %v274
  %v342 = vunpack.c.h.b16 %v274
  %v343 = vunpack.c.l.b16 %v275
  %v344 = vunpack.c.h.b16 %v275
  %v345 = vunpack.c.l.b16 %v276
  %v346 = vunpack.c.h.b16 %v276
  %v347 = vunpack.c.l.b16 %v277
  %v348 = vunpack.c.h.b16 %v277
  %v349 = vunpack.c.l.b16 %v278
  %v350 = vunpack.c.h.b16 %v278
  %v351 = vunpack.c.l.b16 %v279
  %v352 = vunpack.c.h.b16 %v279
  %v353 = vunpack.c.l.b16 %v280
  %v354 = vunpack.c.h.b16 %v280
  %v355 = vunpack.c.l.b16 %v281
  %v356 = vunpack.c.h.b16 %v281
  %v357 = vunpack.c.l.b16 %v282
  %v358 = vunpack.c.h.b16 %v282
  %v359 = vunpack.c.l.b16 %v283
  %v360 = vunpack.c.h.b16 %v283
  %v361 = vunpack.c.l.b16 %v284
  %v362 = vunpack.c.h.b16 %v284
  %v363 = vunpack.c.l.b16 %v285
  %v364 = vunpack.c.h.b16 %v285
  %v365 = vunpack.c.l.b16 %v286
  %v366 = vunpack.c.h.b16 %v286
  %v367 = vunpack.c.l.b16 %v287
  %v368 = vunpack.c.h.b16 %v287
  %v369 = vunpack.c.l.b16 %v288
  %v370 = vunpack.c.h.b16 %v288
  %v371 = vunpack.c.l.b16 %v289
  %v372 = vunpack.c.h.b16 %v289
  %v373 = vunpack.c.l.b16 %v290
  %v374 = vunpack.c.h.b16 %v290
  %v375 = vunpack.c.l.b16 %v291
  %v376 = vunpack.c.h.b16 %v291
  %v377 = vunpack.c.l.b16 %v292
  %v378 = vunpack.c.h.b16 %v292
  %v379 = vunpack.c.l.b16 %v293
  %v380 = vunpack.c.h.b16 %v293
  %v381 = vunpack.c.l.b16 %v294
  %v382 = vunpack.c.h.b16 %v294
  %v383 = vunpack.c.l.b16 %v295
  %v384 = vunpack.c.h.b16 %v295
  %v385 = vunpack.c.l.b16 %v296
  %v386 = vunpack.c.h.b16 %v296
  %v387 = vunpack.c.l.b16 %v297
  %v388 = vunpack.c.h.b16 %v297
  %v389 = vunpack.c.l.b16 %v298
  %v390 = vunpack.c.h.b16 %v298
  %v391 = vunpack.c.l.b16 %v299
  %v392 = vunpack.c.h.b16 %v299
  %v393 = vunpack.c.l.b16 %v300
  %v394 = vunpack.c.h.b16 %v300
  %v395 = vunpack.c.l.b16 %v301
  %v396 = vunpack.c.h.b16 %v301
  %v397 = vunpack.c.l.b16 %v302
  %v398 = vunpack.c.h.b16 %v302
  %v399 = vpack.c.b16 %v337, %v335
  %v400 = vpack.c.b16 %v338, %v336
  %v401 = vpack.c.b16 %v341, %v339
  %v402 = vpack.c.b16 %v342, %v340
  %v403 = vpack.c.b16 %v345, %v343
  %v404 = vpack.c.b16 %v346, %v344
  %v405 = vpack.c.b16 %v349, %v347
  %v406 = vpack.c.b16 %v350, %v348
  %v407 = vpack.c.b16 %v353, %v351
  %v408 = vpack.c.b16 %v354, %v352
  %v409 = vpack.c.b16 %v357, %v355
  %v410 = vpack.c.b16 %v358, %v356
  %v411 = vpack.c.b16 %v361, %v359
  %v412 = vpack.c.b16 %v362, %v360
  %v413 = vpack.c.b16 %v365, %v363
  %v414 = vpack.c.b16 %v366, %v364
  %v415 = vpack.c.b16 %v369, %v367
  %v416 = vpack.c.b16 %v370, %v368
  %v417 = vpack.c.b16 %v373, %v371
  %v418 = vpack.c.b16 %v374, %v372
  %v419 = vpack.c.b16 %v377, %v375
  %v420 = vpack.c.b16 %v378, %v376
  %v421 = vpack.c.b16 %v381, %v379
  %v422 = vpack.c.b16 %v382, %v380
  %v423 = vpack.c.b16 %v385, %v383
  %v424 = vpack.c.b16 %v386, %v384
  %v425 = vpack.c.b16 %v389, %v387
  %v426 = vpack.c.b16 %v390, %v388
  %v427 = vpack.c.b16 %v393, %v391
  %v428 = vpack.c.b16 %v394, %v392
  %v429 = vpack.c.b16 %v397, %v395
  %v430 = vpack.c.b16 %v398, %v396
  %463 = vmatprep.subr.bf16.mxu0 %v400
  %464 = vmatpush1.bf16.msra.mxu0 %v399
  %465 = vmatprep.subr.bf16.mxu0 %v402
  %466 = vmatpush1.bf16.msra.mxu0 %v401
  %467 = vmatprep.subr.bf16.mxu0 %v404
  %468 = vmatpush1.bf16.msra.mxu0 %v403
  %469 = vmatprep.subr.bf16.mxu0 %v406
  %470 = vmatpush1.bf16.msra.mxu0 %v405
  %471 = vmatprep.subr.bf16.mxu0 %v408
  %472 = vmatpush1.bf16.msra.mxu0 %v407
  %473 = vmatprep.subr.bf16.mxu0 %v410
  %474 = vmatpush1.bf16.msra.mxu0 %v409
  %475 = vmatprep.subr.bf16.mxu0 %v412
  %476 = vmatpush1.bf16.msra.mxu0 %v411
  %477 = vmatprep.subr.bf16.mxu0 %v414
  %478 = vmatpush1.bf16.msra.mxu0 %v413
  %479 = vmatprep.subr.bf16.mxu0 %v416
  %480 = vmatpush1.bf16.msra.mxu0 %v415
  %481 = vmatprep.subr.bf16.mxu0 %v418
  %482 = vmatpush1.bf16.msra.mxu0 %v417
  %483 = vmatprep.subr.bf16.mxu0 %v420
  %484 = vmatpush1.bf16.msra.mxu0 %v419
  %485 = vmatprep.subr.bf16.mxu0 %v422
  %486 = vmatpush1.bf16.msra.mxu0 %v421
  %487 = vmatprep.subr.bf16.mxu0 %v424
  %488 = vmatpush1.bf16.msra.mxu0 %v423
  %489 = vmatprep.subr.bf16.mxu0 %v426
  %490 = vmatpush1.bf16.msra.mxu0 %v425
  %491 = vmatprep.subr.bf16.mxu0 %v428
  %492 = vmatpush1.bf16.msra.mxu0 %v427
  %493 = vmatprep.subr.bf16.mxu0 %v430
  %494 = vmatpush1.bf16.msra.mxu0 %v429
  %495 = vmatprep.mubr.bf16.mxu0 %v211
  %496 = vmatmul.mubr.bf16.gmra.mrb[0].mxu0 %v210
  %v497 = vpop.f32.mrb[0].mxu0
  %v498 = vadd.f32 0.0, %v497
  %v499 = vpop.f32.mrb[0].mxu0
  %v500 = vadd.f32 0.0, %v499
  %v501 = vpop.f32.mrb[0].mxu0
  %v502 = vadd.f32 0.0, %v501
  %v503 = vpop.f32.mrb[0].mxu0
  %v504 = vadd.f32 0.0, %v503
  %505 = vmatprep.mubr.bf16.mxu0 %v213
  %506 = vmatmul.mubr.bf16.gmra.mrb[0].mxu0 %v212
  %v507 = vpop.f32.mrb[0].mxu0
  %v508 = vadd.f32 0.0, %v507
  %v509 = vpop.f32.mrb[0].mxu0
  %v510 = vadd.f32 0.0, %v509
  %v511 = vpop.f32.mrb[0].mxu0
  %v512 = vadd.f32 0.0, %v511
  %v513 = vpop.f32.mrb[0].mxu0
  %v514 = vadd.f32 0.0, %v513
  %515 = vdwg.mxu0
  %vm516 = vsmask.f32 256
  %v518 = vshrl.u32 %v233, 16
  %v520 = vrot.slane %v518, 7
  %v522 = vshrl.u32 %v235, 16
  %v524 = vrot.slane %v522, 7
  %v525 = vshll.u32 %v235, 16
  %v527 = vor.u32 %v524, %v525
  %v528 = vsel %vm516, %v520, %v527
  %v530 = vshrl.u32 %v234, 16
  %v532 = vrot.slane %v530, 7
  %v534 = vshrl.u32 %v236, 16
  %v536 = vrot.slane %v534, 7
  %v537 = vshll.u32 %v236, 16
  %v539 = vor.u32 %v536, %v537
  %v540 = vsel %vm516, %v532, %v539
  %v542 = vshrl.u32 %v237, 16
  %v544 = vrot.slane %v542, 7
  %v545 = vshll.u32 %v237, 16
  %v547 = vor.u32 %v544, %v545
  %v548 = vsel %vm516, %v524, %v547
  %v550 = vshrl.u32 %v238, 16
  %v552 = vrot.slane %v550, 7
  %v553 = vshll.u32 %v238, 16
  %v555 = vor.u32 %v552, %v553
  %v556 = vsel %vm516, %v536, %v555
  %v593 = vunpack.c.l.b16 %v239
  %v594 = vunpack.c.h.b16 %v239
  %v595 = vunpack.c.l.b16 %v240
  %v596 = vunpack.c.h.b16 %v240
  %v597 = vunpack.c.l.b16 %v241
  %v598 = vunpack.c.h.b16 %v241
  %v599 = vunpack.c.l.b16 %v242
  %v600 = vunpack.c.h.b16 %v242
  %v601 = vunpack.c.l.b16 %v243
  %v602 = vunpack.c.h.b16 %v243
  %v603 = vunpack.c.l.b16 %v244
  %v604 = vunpack.c.h.b16 %v244
  %v605 = vunpack.c.l.b16 %v245
  %v606 = vunpack.c.h.b16 %v245
  %v607 = vunpack.c.l.b16 %v246
  %v608 = vunpack.c.h.b16 %v246
  %v609 = vunpack.c.l.b16 %v247
  %v610 = vunpack.c.h.b16 %v247
  %v611 = vunpack.c.l.b16 %v248
  %v612 = vunpack.c.h.b16 %v248
  %v613 = vunpack.c.l.b16 %v249
  %v614 = vunpack.c.h.b16 %v249
  %v615 = vunpack.c.l.b16 %v250
  %v616 = vunpack.c.h.b16 %v250
  %v617 = vunpack.c.l.b16 %v251
  %v618 = vunpack.c.h.b16 %v251
  %v619 = vunpack.c.l.b16 %v252
  %v620 = vunpack.c.h.b16 %v252
  %v621 = vunpack.c.l.b16 %v253
  %v622 = vunpack.c.h.b16 %v253
  %v623 = vunpack.c.l.b16 %v254
  %v624 = vunpack.c.h.b16 %v254
  %v625 = vunpack.c.l.b16 %v255
  %v626 = vunpack.c.h.b16 %v255
  %v627 = vunpack.c.l.b16 %v256
  %v628 = vunpack.c.h.b16 %v256
  %v629 = vunpack.c.l.b16 %v257
  %v630 = vunpack.c.h.b16 %v257
  %v631 = vunpack.c.l.b16 %v258
  %v632 = vunpack.c.h.b16 %v258
  %v633 = vunpack.c.l.b16 %v259
  %v634 = vunpack.c.h.b16 %v259
  %v635 = vunpack.c.l.b16 %v260
  %v636 = vunpack.c.h.b16 %v260
  %v637 = vunpack.c.l.b16 %v261
  %v638 = vunpack.c.h.b16 %v261
  %v639 = vunpack.c.l.b16 %v262
  %v640 = vunpack.c.h.b16 %v262
  %v641 = vunpack.c.l.b16 %v263
  %v642 = vunpack.c.h.b16 %v263
  %v643 = vunpack.c.l.b16 %v264
  %v644 = vunpack.c.h.b16 %v264
  %v645 = vunpack.c.l.b16 %v265
  %v646 = vunpack.c.h.b16 %v265
  %v647 = vunpack.c.l.b16 %v266
  %v648 = vunpack.c.h.b16 %v266
  %v649 = vunpack.c.l.b16 %v267
  %v650 = vunpack.c.h.b16 %v267
  %v651 = vunpack.c.l.b16 %v268
  %v652 = vunpack.c.h.b16 %v268
  %v653 = vunpack.c.l.b16 %v269
  %v654 = vunpack.c.h.b16 %v269
  %v655 = vunpack.c.l.b16 %v270
  %v656 = vunpack.c.h.b16 %v270
  %v657 = vpack.c.b16 %v595, %v593
  %v658 = vpack.c.b16 %v596, %v594
  %v659 = vpack.c.b16 %v599, %v597
  %v660 = vpack.c.b16 %v600, %v598
  %v661 = vpack.c.b16 %v603, %v601
  %v662 = vpack.c.b16 %v604, %v602
  %v663 = vpack.c.b16 %v607, %v605
  %v664 = vpack.c.b16 %v608, %v606
  %v665 = vpack.c.b16 %v611, %v609
  %v666 = vpack.c.b16 %v612, %v610
  %v667 = vpack.c.b16 %v615, %v613
  %v668 = vpack.c.b16 %v616, %v614
  %v669 = vpack.c.b16 %v619, %v617
  %v670 = vpack.c.b16 %v620, %v618
  %v671 = vpack.c.b16 %v623, %v621
  %v672 = vpack.c.b16 %v624, %v622
  %v673 = vpack.c.b16 %v627, %v625
  %v674 = vpack.c.b16 %v628, %v626
  %v675 = vpack.c.b16 %v631, %v629
  %v676 = vpack.c.b16 %v632, %v630
  %v677 = vpack.c.b16 %v635, %v633
  %v678 = vpack.c.b16 %v636, %v634
  %v679 = vpack.c.b16 %v639, %v637
  %v680 = vpack.c.b16 %v640, %v638
  %v681 = vpack.c.b16 %v643, %v641
  %v682 = vpack.c.b16 %v644, %v642
  %v683 = vpack.c.b16 %v647, %v645
  %v684 = vpack.c.b16 %v648, %v646
  %v685 = vpack.c.b16 %v651, %v649
  %v686 = vpack.c.b16 %v652, %v650
  %v687 = vpack.c.b16 %v655, %v653
  %v688 = vpack.c.b16 %v656, %v654
  %721 = vmatprep.subr.bf16.mxu0 %v658
  %722 = vmatpush1.bf16.msra.mxu0 %v657
  %723 = vmatprep.subr.bf16.mxu0 %v660
  %724 = vmatpush1.bf16.msra.mxu0 %v659
  %725 = vmatprep.subr.bf16.mxu0 %v662
  %726 = vmatpush1.bf16.msra.mxu0 %v661
  %727 = vmatprep.subr.bf16.mxu0 %v664
  %728 = vmatpush1.bf16.msra.mxu0 %v663
  %729 = vmatprep.subr.bf16.mxu0 %v666
  %730 = vmatpush1.bf16.msra.mxu0 %v665
  %731 = vmatprep.subr.bf16.mxu0 %v668
  %732 = vmatpush1.bf16.msra.mxu0 %v667
  %733 = vmatprep.subr.bf16.mxu0 %v670
  %734 = vmatpush1.bf16.msra.mxu0 %v669
  %735 = vmatprep.subr.bf16.mxu0 %v672
  %736 = vmatpush1.bf16.msra.mxu0 %v671
  %737 = vmatprep.subr.bf16.mxu0 %v674
  %738 = vmatpush1.bf16.msra.mxu0 %v673
  %739 = vmatprep.subr.bf16.mxu0 %v676
  %740 = vmatpush1.bf16.msra.mxu0 %v675
  %741 = vmatprep.subr.bf16.mxu0 %v678
  %742 = vmatpush1.bf16.msra.mxu0 %v677
  %743 = vmatprep.subr.bf16.mxu0 %v680
  %744 = vmatpush1.bf16.msra.mxu0 %v679
  %745 = vmatprep.subr.bf16.mxu0 %v682
  %746 = vmatpush1.bf16.msra.mxu0 %v681
  %747 = vmatprep.subr.bf16.mxu0 %v684
  %748 = vmatpush1.bf16.msra.mxu0 %v683
  %749 = vmatprep.subr.bf16.mxu0 %v686
  %750 = vmatpush1.bf16.msra.mxu0 %v685
  %751 = vmatprep.subr.bf16.mxu0 %v688
  %752 = vmatpush1.bf16.msra.mxu0 %v687
  %753 = vmatprep.mubr.bf16.mxu0 %v540
  %754 = vmatmul.mubr.bf16.gmra.mrb[0].mxu0 %v528
  %v755 = vpop.f32.mrb[0].mxu0
  %v756 = vadd.f32 %v498, %v755
  %v757 = vpop.f32.mrb[0].mxu0
  %v758 = vadd.f32 %v500, %v757
  %v759 = vpop.f32.mrb[0].mxu0
  %v760 = vadd.f32 %v502, %v759
  %v761 = vpop.f32.mrb[0].mxu0
  %v762 = vadd.f32 %v504, %v761
  %763 = vmatprep.mubr.bf16.mxu0 %v556
  %764 = vmatmul.mubr.bf16.gmra.mrb[0].mxu0 %v548
  %v765 = vpop.f32.mrb[0].mxu0
  %v766 = vadd.f32 %v508, %v765
  %v767 = vpop.f32.mrb[0].mxu0
  %v768 = vadd.f32 %v510, %v767
  %v769 = vpop.f32.mrb[0].mxu0
  %v770 = vadd.f32 %v512, %v769
  %v771 = vpop.f32.mrb[0].mxu0
  %v772 = vadd.f32 %v514, %v771
  %773 = vdwg.mxu0
  %v774 = vld [vmem:[#allocation2 + $0x10] sm:$0xff]
  %v775 = vld [vmem:[#allocation2 + $0x18] sm:$0xff]
  %v776 = vld [vmem:[#allocation2 + $0x20] sm:$0xff]
  %v777 = vld [vmem:[#allocation2 + $0x28] sm:$0xff]
  %v778 = vld [vmem:[#allocation2 + $0x30] sm:$0x1]
  %v779 = vld [vmem:[#allocation2 + $0x38] sm:$0x1]
  %v781 = vshrl.u32 %v106, 16
  %v783 = vrot.slane %v781, 7
  %v784 = vshll.u32 %v106, 16
  %v786 = vor.u32 %v783, %v784
  %v788 = vshrl.u32 %v107, 16
  %v790 = vrot.slane %v788, 7
  %v791 = vshll.u32 %v107, 16
  %v793 = vor.u32 %v790, %v791
  %v794 = vsel %vm516, %v783, %v793
  %v798 = vmul.bf16 %v774, %v786
  %v799 = vmul.bf16 %v775, %v786
  %v800 = vmul.bf16 %v776, %v794
  %v801 = vmul.bf16 %v777, %v794
  %v802 = vmul.bf16 %v778, %v790
  %v803 = vmul.bf16 %v779, %v790
  %v804 = vld [vmem:[%s1 + $0x200] sm:$0xff]
  %v805 = vld [vmem:[%s1 + $0x208] sm:$0xff]
  %v806 = vld [vmem:[%s1 + $0x210] sm:$0xff]
  %v807 = vld [vmem:[%s1 + $0x218] sm:$0xff]
  %v808 = vld [vmem:[%s1 + $0x220] sm:$0xff]
  %v809 = vld [vmem:[%s1 + $0x228] sm:$0xff]
  %v810 = vld [vmem:[%s1 + $0x230] sm:$0xff]
  %v811 = vld [vmem:[%s1 + $0x238] sm:$0xff]
  %v812 = vld [vmem:[%s1 + $0x240] sm:$0xff]
  %v813 = vld [vmem:[%s1 + $0x248] sm:$0xff]
  %v814 = vld [vmem:[%s1 + $0x250] sm:$0xff]
  %v815 = vld [vmem:[%s1 + $0x258] sm:$0xff]
  %v816 = vld [vmem:[%s1 + $0x260] sm:$0xff]
  %v817 = vld [vmem:[%s1 + $0x268] sm:$0xff]
  %v818 = vld [vmem:[%s1 + $0x270] sm:$0xff]
  %v819 = vld [vmem:[%s1 + $0x278] sm:$0xff]
  %v820 = vld [vmem:[%s1 + $0x280] sm:$0xff]
  %v821 = vld [vmem:[%s1 + $0x288] sm:$0xff]
  %v822 = vld [vmem:[%s1 + $0x290] sm:$0xff]
  %v823 = vld [vmem:[%s1 + $0x298] sm:$0xff]
  %v824 = vld [vmem:[%s1 + $0x2a0] sm:$0xff]
  %v825 = vld [vmem:[%s1 + $0x2a8] sm:$0xff]
  %v826 = vld [vmem:[%s1 + $0x2b0] sm:$0xff]
  %v827 = vld [vmem:[%s1 + $0x2b8] sm:$0xff]
  %v828 = vld [vmem:[%s1 + $0x2c0] sm:$0xff]
  %v829 = vld [vmem:[%s1 + $0x2c8] sm:$0xff]
  %v830 = vld [vmem:[%s1 + $0x2d0] sm:$0xff]
  %v831 = vld [vmem:[%s1 + $0x2d8] sm:$0xff]
  %v832 = vld [vmem:[%s1 + $0x2e0] sm:$0xff]
  %v833 = vld [vmem:[%s1 + $0x2e8] sm:$0xff]
  %v834 = vld [vmem:[%s1 + $0x2f0] sm:$0xff]
  %v835 = vld [vmem:[%s1 + $0x2f8] sm:$0xff]
  %v837 = vshrl.u32 %v798, 16
  %v839 = vshll.u32 %v798, 16
  %v841 = vrot.slane %v839, 1
  %v842 = vor.u32 %v837, %v841
  %v844 = vshll.u32 %v800, 16
  %v846 = vrot.slane %v844, 1
  %v847 = vsel %vm214, %v842, %v846
  %v849 = vshrl.u32 %v799, 16
  %v851 = vshll.u32 %v799, 16
  %v853 = vrot.slane %v851, 1
  %v854 = vor.u32 %v849, %v853
  %v856 = vshll.u32 %v801, 16
  %v858 = vrot.slane %v856, 1
  %v859 = vsel %vm214, %v854, %v858
  %v860 = vshrl.u32 %v800, 16
  %v862 = vor.u32 %v860, %v846
  %v864 = vshll.u32 %v802, 16
  %v866 = vrot.slane %v864, 1
  %v867 = vsel %vm214, %v862, %v866
  %v868 = vshrl.u32 %v801, 16
  %v870 = vor.u32 %v868, %v858
  %v872 = vshll.u32 %v803, 16
  %v874 = vrot.slane %v872, 1
  %v875 = vsel %vm214, %v870, %v874
  %v912 = vunpack.c.l.b16 %v804
  %v913 = vunpack.c.h.b16 %v804
  %v914 = vunpack.c.l.b16 %v805
  %v915 = vunpack.c.h.b16 %v805
  %v916 = vunpack.c.l.b16 %v806
  %v917 = vunpack.c.h.b16 %v806
  %v918 = vunpack.c.l.b16 %v807
  %v919 = vunpack.c.h.b16 %v807
  %v920 = vunpack.c.l.b16 %v808
  %v921 = vunpack.c.h.b16 %v808
  %v922 = vunpack.c.l.b16 %v809
  %v923 = vunpack.c.h.b16 %v809
  %v924 = vunpack.c.l.b16 %v810
  %v925 = vunpack.c.h.b16 %v810
  %v926 = vunpack.c.l.b16 %v811
  %v927 = vunpack.c.h.b16 %v811
  %v928 = vunpack.c.l.b16 %v812
  %v929 = vunpack.c.h.b16 %v812
  %v930 = vunpack.c.l.b16 %v813
  %v931 = vunpack.c.h.b16 %v813
  %v932 = vunpack.c.l.b16 %v814
  %v933 = vunpack.c.h.b16 %v814
  %v934 = vunpack.c.l.b16 %v815
  %v935 = vunpack.c.h.b16 %v815
  %v936 = vunpack.c.l.b16 %v816
  %v937 = vunpack.c.h.b16 %v816
  %v938 = vunpack.c.l.b16 %v817
  %v939 = vunpack.c.h.b16 %v817
  %v940 = vunpack.c.l.b16 %v818
  %v941 = vunpack.c.h.b16 %v818
  %v942 = vunpack.c.l.b16 %v819
  %v943 = vunpack.c.h.b16 %v819
  %v944 = vunpack.c.l.b16 %v820
  %v945 = vunpack.c.h.b16 %v820
  %v946 = vunpack.c.l.b16 %v821
  %v947 = vunpack.c.h.b16 %v821
  %v948 = vunpack.c.l.b16 %v822
  %v949 = vunpack.c.h.b16 %v822
  %v950 = vunpack.c.l.b16 %v823
  %v951 = vunpack.c.h.b16 %v823
  %v952 = vunpack.c.l.b16 %v824
  %v953 = vunpack.c.h.b16 %v824
  %v954 = vunpack.c.l.b16 %v825
  %v955 = vunpack.c.h.b16 %v825
  %v956 = vunpack.c.l.b16 %v826
  %v957 = vunpack.c.h.b16 %v826
  %v958 = vunpack.c.l.b16 %v827
  %v959 = vunpack.c.h.b16 %v827
  %v960 = vunpack.c.l.b16 %v828
  %v961 = vunpack.c.h.b16 %v828
  %v962 = vunpack.c.l.b16 %v829
  %v963 = vunpack.c.h.b16 %v829
  %v964 = vunpack.c.l.b16 %v830
  %v965 = vunpack.c.h.b16 %v830
  %v966 = vunpack.c.l.b16 %v831
  %v967 = vunpack.c.h.b16 %v831
  %v968 = vunpack.c.l.b16 %v832
  %v969 = vunpack.c.h.b16 %v832
  %v970 = vunpack.c.l.b16 %v833
  %v971 = vunpack.c.h.b16 %v833
  %v972 = vunpack.c.l.b16 %v834
  %v973 = vunpack.c.h.b16 %v834
  %v974 = vunpack.c.l.b16 %v835
  %v975 = vunpack.c.h.b16 %v835
  %v976 = vpack.c.b16 %v914, %v912
  %v977 = vpack.c.b16 %v915, %v913
  %v978 = vpack.c.b16 %v918, %v916
  %v979 = vpack.c.b16 %v919, %v917
  %v980 = vpack.c.b16 %v922, %v920
  %v981 = vpack.c.b16 %v923, %v921
  %v982 = vpack.c.b16 %v926, %v924
  %v983 = vpack.c.b16 %v927, %v925
  %v984 = vpack.c.b16 %v930, %v928
  %v985 = vpack.c.b16 %v931, %v929
  %v986 = vpack.c.b16 %v934, %v932
  %v987 = vpack.c.b16 %v935, %v933
  %v988 = vpack.c.b16 %v938, %v936
  %v989 = vpack.c.b16 %v939, %v937
  %v990 = vpack.c.b16 %v942, %v940
  %v991 = vpack.c.b16 %v943, %v941
  %v992 = vpack.c.b16 %v946, %v944
  %v993 = vpack.c.b16 %v947, %v945
  %v994 = vpack.c.b16 %v950, %v948
  %v995 = vpack.c.b16 %v951, %v949
  %v996 = vpack.c.b16 %v954, %v952
  %v997 = vpack.c.b16 %v955, %v953
  %v998 = vpack.c.b16 %v958, %v956
  %v999 = vpack.c.b16 %v959, %v957
  %v1000 = vpack.c.b16 %v962, %v960
  %v1001 = vpack.c.b16 %v963, %v961
  %v1002 = vpack.c.b16 %v966, %v964
  %v1003 = vpack.c.b16 %v967, %v965
  %v1004 = vpack.c.b16 %v970, %v968
  %v1005 = vpack.c.b16 %v971, %v969
  %v1006 = vpack.c.b16 %v974, %v972
  %v1007 = vpack.c.b16 %v975, %v973
  %1040 = vmatprep.subr.bf16.mxu0 %v977
  %1041 = vmatpush1.bf16.msra.mxu0 %v976
  %1042 = vmatprep.subr.bf16.mxu0 %v979
  %1043 = vmatpush1.bf16.msra.mxu0 %v978
  %1044 = vmatprep.subr.bf16.mxu0 %v981
  %1045 = vmatpush1.bf16.msra.mxu0 %v980
  %1046 = vmatprep.subr.bf16.mxu0 %v983
  %1047 = vmatpush1.bf16.msra.mxu0 %v982
  %1048 = vmatprep.subr.bf16.mxu0 %v985
  %1049 = vmatpush1.bf16.msra.mxu0 %v984
  %1050 = vmatprep.subr.bf16.mxu0 %v987
  %1051 = vmatpush1.bf16.msra.mxu0 %v986
  %1052 = vmatprep.subr.bf16.mxu0 %v989
  %1053 = vmatpush1.bf16.msra.mxu0 %v988
  %1054 = vmatprep.subr.bf16.mxu0 %v991
  %1055 = vmatpush1.bf16.msra.mxu0 %v990
  %1056 = vmatprep.subr.bf16.mxu0 %v993
  %1057 = vmatpush1.bf16.msra.mxu0 %v992
  %1058 = vmatprep.subr.bf16.mxu0 %v995
  %1059 = vmatpush1.bf16.msra.mxu0 %v994
  %1060 = vmatprep.subr.bf16.mxu0 %v997
  %1061 = vmatpush1.bf16.msra.mxu0 %v996
  %1062 = vmatprep.subr.bf16.mxu0 %v999
  %1063 = vmatpush1.bf16.msra.mxu0 %v998
  %1064 = vmatprep.subr.bf16.mxu0 %v1001
  %1065 = vmatpush1.bf16.msra.mxu0 %v1000
  %1066 = vmatprep.subr.bf16.mxu0 %v1003
  %1067 = vmatpush1.bf16.msra.mxu0 %v1002
  %1068 = vmatprep.subr.bf16.mxu0 %v1005
  %1069 = vmatpush1.bf16.msra.mxu0 %v1004
  %1070 = vmatprep.subr.bf16.mxu0 %v1007
  %1071 = vmatpush1.bf16.msra.mxu0 %v1006
  %1072 = vmatprep.mubr.bf16.mxu0 %v859
  %1073 = vmatmul.mubr.bf16.gmra.mrb[0].mxu0 %v847
  %v1074 = vpop.f32.mrb[0].mxu0
  %v1075 = vadd.f32 0.0, %v1074
  %v1076 = vpop.f32.mrb[0].mxu0
  %v1077 = vadd.f32 0.0, %v1076
  %v1078 = vpop.f32.mrb[0].mxu0
  %v1079 = vadd.f32 0.0, %v1078
  %v1080 = vpop.f32.mrb[0].mxu0
  %v1081 = vadd.f32 0.0, %v1080
  %1082 = vmatprep.mubr.bf16.mxu0 %v875
  %1083 = vmatmul.mubr.bf16.gmra.mrb[0].mxu0 %v867
  %v1084 = vpop.f32.mrb[0].mxu0
  %v1085 = vadd.f32 0.0, %v1084
  %v1086 = vpop.f32.mrb[0].mxu0
  %v1087 = vadd.f32 0.0, %v1086
  %v1088 = vpop.f32.mrb[0].mxu0
  %v1089 = vadd.f32 0.0, %v1088
  %v1090 = vpop.f32.mrb[0].mxu0
  %v1091 = vadd.f32 0.0, %v1090
  %1092 = vdwg.mxu0
  %v1093 = vadd.f32 %v756, %v1075
  %v1094 = vadd.f32 %v758, %v1077
  %v1095 = vadd.f32 %v760, %v1079
  %v1096 = vadd.f32 %v762, %v1081
  %v1097 = vadd.f32 %v766, %v1085
  %v1098 = vadd.f32 %v768, %v1087
  %v1099 = vadd.f32 %v770, %v1089
  %v1100 = vadd.f32 %v772, %v1091
  %v1101 = vld [vmem:[%s3] sm:$0x3]
  %v1102 = vld [vmem:[%s4] sm:$0x3]
  %v1103 = vadd.f32 %v1093, %v1095
  %v1104 = vadd.f32 %v1103, %v1097
  %v1105 = vadd.f32 %v1104, %v1099
  %v1106 = vrot.slane %v1105, 4
  %v1107 = vadd.f32 %v1105, %v1106
  %v1108 = vrot.slane %v1107, 2
  %v1109 = vadd.f32 %v1107, %v1108
  %v1110 = vrot.slane %v1109, 1
  %v1111 = vadd.f32 %v1109, %v1110
  %v1112 = vadd.f32 %v1094, %v1096
  %v1113 = vadd.f32 %v1112, %v1098
  %v1114 = vadd.f32 %v1113, %v1100
  %v1115 = vrot.slane %v1114, 4
  %v1116 = vadd.f32 %v1114, %v1115
  %v1117 = vrot.slane %v1116, 2
  %v1118 = vadd.f32 %v1116, %v1117
  %v1119 = vrot.slane %v1118, 1
  %v1120 = vadd.f32 %v1118, %v1119
  %1121 = vrot.lane.b32.xlu0 %v1111, 16
  %v1122 = vpop.permute.xlu0 %1121
  %1123 = vrot.lane.b32.xlu0 %v1120, 16
  %v1124 = vpop.permute.xlu0 %1123
  %v1125 = vlaneseq
  %v1126 = vand.u32 %v1125, 127
  %vm1127 = vcmp.lt.s32.totalorder %v1126, 16
  %v1128 = vsel %vm1127, %v1122, %v1124
  %v1129 = vsel %vm1127, %v1124, %v1122
  %v1130 = vadd.f32 %v1111, %v1129
  %v1131 = vadd.f32 %v1120, %v1128
  %1132 = vrot.lane.b32.xlu0 %v1130, 32
  %v1133 = vpop.permute.xlu0 %1132
  %1134 = vrot.lane.b32.xlu0 %v1131, 32
  %v1135 = vpop.permute.xlu0 %1134
  %vm1136 = vcmp.lt.s32.totalorder %v1126, 32
  %v1137 = vsel %vm1136, %v1133, %v1135
  %v1138 = vsel %vm1136, %v1135, %v1133
  %v1139 = vadd.f32 %v1130, %v1138
  %v1140 = vadd.f32 %v1131, %v1137
  %1141 = vrot.lane.b32.xlu0 %v1139, 64
  %v1142 = vpop.permute.xlu0 %1141
  %1143 = vrot.lane.b32.xlu0 %v1140, 64
  %v1144 = vpop.permute.xlu0 %1143
  %vm1145 = vcmp.lt.s32.totalorder %v1126, 64
  %v1146 = vsel %vm1145, %v1142, %v1144
  %v1147 = vsel %vm1145, %v1144, %v1142
  %v1148 = vadd.f32 %v1139, %v1147
  %v1149 = vadd.f32 %v1140, %v1146
  %v1150 = vadd.f32 %v1148, %v1149
  %v1151 = vmul.f32 %v1150, 0.001953125
  %v1152 = vmul.f32 %v1093, %v1093
  %v1153 = vmul.f32 %v1094, %v1094
  %v1154 = vmul.f32 %v1095, %v1095
  %v1155 = vmul.f32 %v1096, %v1096
  %v1156 = vmul.f32 %v1097, %v1097
  %v1157 = vmul.f32 %v1098, %v1098
  %v1158 = vmul.f32 %v1099, %v1099
  %v1159 = vmul.f32 %v1100, %v1100
  %v1160 = vadd.f32 %v1152, %v1154
  %v1161 = vadd.f32 %v1160, %v1156
  %v1162 = vadd.f32 %v1161, %v1158
  %v1163 = vrot.slane %v1162, 4
  %v1164 = vadd.f32 %v1162, %v1163
  %v1165 = vrot.slane %v1164, 2
  %v1166 = vadd.f32 %v1164, %v1165
  %v1167 = vrot.slane %v1166, 1
  %v1168 = vadd.f32 %v1166, %v1167
  %v1169 = vadd.f32 %v1153, %v1155
  %v1170 = vadd.f32 %v1169, %v1157
  %v1171 = vadd.f32 %v1170, %v1159
  %v1172 = vrot.slane %v1171, 4
  %v1173 = vadd.f32 %v1171, %v1172
  %v1174 = vrot.slane %v1173, 2
  %v1175 = vadd.f32 %v1173, %v1174
  %v1176 = vrot.slane %v1175, 1
  %v1177 = vadd.f32 %v1175, %v1176
  %1178 = vrot.lane.b32.xlu0 %v1168, 16
  %v1179 = vpop.permute.xlu0 %1178
  %1180 = vrot.lane.b32.xlu0 %v1177, 16
  %v1181 = vpop.permute.xlu0 %1180
  %v1182 = vsel %vm1127, %v1179, %v1181
  %v1183 = vsel %vm1127, %v1181, %v1179
  %v1184 = vadd.f32 %v1168, %v1183
  %v1185 = vadd.f32 %v1177, %v1182
  %1186 = vrot.lane.b32.xlu0 %v1184, 32
  %v1187 = vpop.permute.xlu0 %1186
  %1188 = vrot.lane.b32.xlu0 %v1185, 32
  %v1189 = vpop.permute.xlu0 %1188
  %v1190 = vsel %vm1136, %v1187, %v1189
  %v1191 = vsel %vm1136, %v1189, %v1187
  %v1192 = vadd.f32 %v1184, %v1191
  %v1193 = vadd.f32 %v1185, %v1190
  %1194 = vrot.lane.b32.xlu0 %v1192, 64
  %v1195 = vpop.permute.xlu0 %1194
  %1196 = vrot.lane.b32.xlu0 %v1193, 64
  %v1197 = vpop.permute.xlu0 %1196
  %v1198 = vsel %vm1145, %v1195, %v1197
  %v1199 = vsel %vm1145, %v1197, %v1195
  %v1200 = vadd.f32 %v1192, %v1199
  %v1201 = vadd.f32 %v1193, %v1198
  %v1202 = vadd.f32 %v1200, %v1201
  %v1203 = vmul.f32 %v1202, 0.001953125
  %v1204 = vmul.f32 %v1151, %v1151
  %v1205 = vsub.f32 %v1203, %v1204
  %v1206 = vadd.f32 %v1205, 1e-05
  %v1207 = vrsqrt.pop %v1206
  %v1209 = vlaneseq
  %v1210 = vshrl.u32 %v1209, 7
  %v1211 = vsub.s32 0, %v1210
  %v1212 = vrot.slane %v1101, %v1211
  %v1213 = vlaneseq
  %v1214 = vshrl.u32 %v1213, 7
  %v1215 = vsub.s32 1, %v1214
  %v1216 = vrot.slane %v1101, %v1215
  %v1219 = vmul.f32 %v1207, %v1212
  %v1220 = vmul.f32 %v1207, %v1216
  %v1221 = vlaneseq
  %v1222 = vshrl.u32 %v1221, 7
  %v1223 = vsub.s32 0, %v1222
  %v1224 = vrot.slane %v1151, %v1223
  %v1225 = vsub.f32 %v1093, %v1224
  %v1226 = vsub.f32 %v1094, %v1224
  %v1227 = vsub.f32 %v1095, %v1224
  %v1228 = vsub.f32 %v1096, %v1224
  %v1229 = vsub.f32 %v1097, %v1224
  %v1230 = vsub.f32 %v1098, %v1224
  %v1231 = vsub.f32 %v1099, %v1224
  %v1232 = vsub.f32 %v1100, %v1224
  %v1233 = vlaneseq
  %v1234 = vshrl.u32 %v1233, 7
  %v1235 = vsub.s32 0, %v1234
  %v1236 = vrot.slane %v1219, %v1235
  %v1237 = vlaneseq
  %v1238 = vshrl.u32 %v1237, 7
  %v1239 = vsub.s32 0, %v1238
  %v1240 = vrot.slane %v1220, %v1239
  %v1241 = vmul.f32 %v1225, %v1236
  %v1242 = vmul.f32 %v1226, %v1240
  %v1243 = vmul.f32 %v1227, %v1236
  %v1244 = vmul.f32 %v1228, %v1240
  %v1245 = vmul.f32 %v1229, %v1236
  %v1246 = vmul.f32 %v1230, %v1240
  %v1247 = vmul.f32 %v1231, %v1236
  %v1248 = vmul.f32 %v1232, %v1240
  %v1250 = vlaneseq
  %v1251 = vshrl.u32 %v1250, 7
  %v1252 = vsub.s32 0, %v1251
  %v1253 = vrot.slane %v1102, %v1252
  %v1254 = vlaneseq
  %v1255 = vshrl.u32 %v1254, 7
  %v1256 = vsub.s32 1, %v1255
  %v1257 = vrot.slane %v1102, %v1256
  %v1260 = vadd.f32 %v1241, %v1253
  %v1261 = vadd.f32 %v1242, %v1257
  %v1262 = vadd.f32 %v1243, %v1253
  %v1263 = vadd.f32 %v1244, %v1257
  %v1264 = vadd.f32 %v1245, %v1253
  %v1265 = vadd.f32 %v1246, %v1257
  %v1266 = vadd.f32 %v1247, %v1253
  %v1267 = vadd.f32 %v1248, %v1257
  %v1268 = vmax.f32 %v1260, -1.0
  %v1269 = vmax.f32 %v1261, -1.0
  %v1270 = vmax.f32 %v1262, -1.0
  %v1271 = vmax.f32 %v1263, -1.0
  %v1272 = vmax.f32 %v1264, -1.0
  %v1273 = vmax.f32 %v1265, -1.0
  %v1274 = vmax.f32 %v1266, -1.0
  %v1275 = vmax.f32 %v1267, -1.0
  %v1276 = vmin.f32 %v1268, 1.0
  %v1277 = vmin.f32 %v1269, 1.0
  %v1278 = vmin.f32 %v1270, 1.0
  %v1279 = vmin.f32 %v1271, 1.0
  %v1280 = vmin.f32 %v1272, 1.0
  %v1281 = vmin.f32 %v1273, 1.0
  %v1282 = vmin.f32 %v1274, 1.0
  %v1283 = vmin.f32 %v1275, 1.0
  %vm1284 = vcmp.gt.f32.partialorder %v1276, 0.0
  %vm1285 = vcmp.gt.f32.partialorder %v1277, 0.0
  %vm1286 = vcmp.gt.f32.partialorder %v1278, 0.0
  %vm1287 = vcmp.gt.f32.partialorder %v1279, 0.0
  %vm1288 = vcmp.gt.f32.partialorder %v1280, 0.0
  %vm1289 = vcmp.gt.f32.partialorder %v1281, 0.0
  %vm1290 = vcmp.gt.f32.partialorder %v1282, 0.0
  %vm1291 = vcmp.gt.f32.partialorder %v1283, 0.0
  %vm1292 = vcmp.lt.f32.partialorder %v1276, 0.0
  %vm1293 = vcmp.lt.f32.partialorder %v1277, 0.0
  %vm1294 = vcmp.lt.f32.partialorder %v1278, 0.0
  %vm1295 = vcmp.lt.f32.partialorder %v1279, 0.0
  %vm1296 = vcmp.lt.f32.partialorder %v1280, 0.0
  %vm1297 = vcmp.lt.f32.partialorder %v1281, 0.0
  %vm1298 = vcmp.lt.f32.partialorder %v1282, 0.0
  %vm1299 = vcmp.lt.f32.partialorder %v1283, 0.0
  %v1300 = vsel %vm1292, -1.0, 0.0
  %v1301 = vsel %vm1293, -1.0, 0.0
  %v1302 = vsel %vm1294, -1.0, 0.0
  %v1303 = vsel %vm1295, -1.0, 0.0
  %v1304 = vsel %vm1296, -1.0, 0.0
  %v1305 = vsel %vm1297, -1.0, 0.0
  %v1306 = vsel %vm1298, -1.0, 0.0
  %v1307 = vsel %vm1299, -1.0, 0.0
  %v1308 = vsel %vm1284, 1.0, %v1300
  %v1309 = vsel %vm1285, 1.0, %v1301
  %v1310 = vsel %vm1286, 1.0, %v1302
  %v1311 = vsel %vm1287, 1.0, %v1303
  %v1312 = vsel %vm1288, 1.0, %v1304
  %v1313 = vsel %vm1289, 1.0, %v1305
  %v1314 = vsel %vm1290, 1.0, %v1306
  %v1315 = vsel %vm1291, 1.0, %v1307
  %v1316 = vpack.c.bf16 %v1310, %v1308
  %v1317 = vpack.c.bf16 %v1311, %v1309
  %v1318 = vpack.c.bf16 %v1314, %v1312
  %v1319 = vpack.c.bf16 %v1315, %v1313
  %1320 = vst [vmem:[#allocation2 + $0x10] sm:$0xff] %v1316
  %1321 = vst [vmem:[#allocation2 + $0x18] sm:$0xff] %v1317
  %1322 = vst [vmem:[#allocation2 + $0x20] sm:$0xff] %v1318
  %1323 = vst [vmem:[#allocation2 + $0x28] sm:$0xff] %v1319
  %v1324 = vld [vmem:[#allocation2] sm:$0x80]
  %v1325 = vld [vmem:[#allocation2 + $0x8] sm:$0x80]
  %v1326 = vld [vmem:[#allocation2 + $0x10] sm:$0xff]
  %v1327 = vld [vmem:[#allocation2 + $0x18] sm:$0xff]
  %v1328 = vld [vmem:[#allocation2 + $0x20] sm:$0xff]
  %v1329 = vld [vmem:[#allocation2 + $0x28] sm:$0xff]
  %v1330 = vmul.bf16 %v1324, %v218
  %v1331 = vmul.bf16 %v1325, %v218
  %v1332 = vmul.bf16 %v1326, %v226
  %v1333 = vmul.bf16 %v1327, %v226
  %v1334 = vmul.bf16 %v1328, %v229
  %v1335 = vmul.bf16 %v1329, %v229
  %v1336 = vld [vmem:[%s2] sm:$0xff]
  %v1337 = vld [vmem:[%s2 + $0x8] sm:$0xff]
  %v1338 = vld [vmem:[%s2 + $0x10] sm:$0xff]
  %v1339 = vld [vmem:[%s2 + $0x18] sm:$0xff]
  %v1340 = vld [vmem:[%s2 + $0x20] sm:$0xff]
  %v1341 = vld [vmem:[%s2 + $0x28] sm:$0xff]
  %v1342 = vld [vmem:[%s2 + $0x30] sm:$0xff]
  %v1343 = vld [vmem:[%s2 + $0x38] sm:$0xff]
  %v1344 = vld [vmem:[%s2 + $0x40] sm:$0xff]
  %v1345 = vld [vmem:[%s2 + $0x48] sm:$0xff]
  %v1346 = vld [vmem:[%s2 + $0x50] sm:$0xff]
  %v1347 = vld [vmem:[%s2 + $0x58] sm:$0xff]
  %v1348 = vld [vmem:[%s2 + $0x60] sm:$0xff]
  %v1349 = vld [vmem:[%s2 + $0x68] sm:$0xff]
  %v1350 = vld [vmem:[%s2 + $0x70] sm:$0xff]
  %v1351 = vld [vmem:[%s2 + $0x78] sm:$0xff]
  %v1352 = vld [vmem:[%s2 + $0x80] sm:$0xff]
  %v1353 = vld [vmem:[%s2 + $0x88] sm:$0xff]
  %v1354 = vld [vmem:[%s2 + $0x90] sm:$0xff]
  %v1355 = vld [vmem:[%s2 + $0x98] sm:$0xff]
  %v1356 = vld [vmem:[%s2 + $0xa0] sm:$0xff]
  %v1357 = vld [vmem:[%s2 + $0xa8] sm:$0xff]
  %v1358 = vld [vmem:[%s2 + $0xb0] sm:$0xff]
  %v1359 = vld [vmem:[%s2 + $0xb8] sm:$0xff]
  %v1360 = vld [vmem:[%s2 + $0xc0] sm:$0xff]
  %v1361 = vld [vmem:[%s2 + $0xc8] sm:$0xff]
  %v1362 = vld [vmem:[%s2 + $0xd0] sm:$0xff]
  %v1363 = vld [vmem:[%s2 + $0xd8] sm:$0xff]
  %v1364 = vld [vmem:[%s2 + $0xe0] sm:$0xff]
  %v1365 = vld [vmem:[%s2 + $0xe8] sm:$0xff]
  %v1366 = vld [vmem:[%s2 + $0xf0] sm:$0xff]
  %v1367 = vld [vmem:[%s2 + $0xf8] sm:$0xff]
  %v1368 = vld [vmem:[%s2 + $0x100] sm:$0xff]
  %v1369 = vld [vmem:[%s2 + $0x108] sm:$0xff]
  %v1370 = vld [vmem:[%s2 + $0x110] sm:$0xff]
  %v1371 = vld [vmem:[%s2 + $0x118] sm:$0xff]
  %v1372 = vld [vmem:[%s2 + $0x120] sm:$0xff]
  %v1373 = vld [vmem:[%s2 + $0x128] sm:$0xff]
  %v1374 = vld [vmem:[%s2 + $0x130] sm:$0xff]
  %v1375 = vld [vmem:[%s2 + $0x138] sm:$0xff]
  %v1376 = vld [vmem:[%s2 + $0x140] sm:$0xff]
  %v1377 = vld [vmem:[%s2 + $0x148] sm:$0xff]
  %v1378 = vld [vmem:[%s2 + $0x150] sm:$0xff]
  %v1379 = vld [vmem:[%s2 + $0x158] sm:$0xff]
  %v1380 = vld [vmem:[%s2 + $0x160] sm:$0xff]
  %v1381 = vld [vmem:[%s2 + $0x168] sm:$0xff]
  %v1382 = vld [vmem:[%s2 + $0x170] sm:$0xff]
  %v1383 = vld [vmem:[%s2 + $0x178] sm:$0xff]
  %v1384 = vld [vmem:[%s2 + $0x180] sm:$0xff]
  %v1385 = vld [vmem:[%s2 + $0x188] sm:$0xff]
  %v1386 = vld [vmem:[%s2 + $0x190] sm:$0xff]
  %v1387 = vld [vmem:[%s2 + $0x198] sm:$0xff]
  %v1388 = vld [vmem:[%s2 + $0x1a0] sm:$0xff]
  %v1389 = vld [vmem:[%s2 + $0x1a8] sm:$0xff]
  %v1390 = vld [vmem:[%s2 + $0x1b0] sm:$0xff]
  %v1391 = vld [vmem:[%s2 + $0x1b8] sm:$0xff]
  %v1392 = vld [vmem:[%s2 + $0x1c0] sm:$0xff]
  %v1393 = vld [vmem:[%s2 + $0x1c8] sm:$0xff]
  %v1394 = vld [vmem:[%s2 + $0x1d0] sm:$0xff]
  %v1395 = vld [vmem:[%s2 + $0x1d8] sm:$0xff]
  %v1396 = vld [vmem:[%s2 + $0x1e0] sm:$0xff]
  %v1397 = vld [vmem:[%s2 + $0x1e8] sm:$0xff]
  %v1398 = vld [vmem:[%s2 + $0x1f0] sm:$0xff]
  %v1399 = vld [vmem:[%s2 + $0x1f8] sm:$0xff]
  %v1432 = vunpack.c.l.b16 %v1368
  %v1433 = vunpack.c.h.b16 %v1368
  %v1434 = vunpack.c.l.b16 %v1369
  %v1435 = vunpack.c.h.b16 %v1369
  %v1436 = vunpack.c.l.b16 %v1370
  %v1437 = vunpack.c.h.b16 %v1370
  %v1438 = vunpack.c.l.b16 %v1371
  %v1439 = vunpack.c.h.b16 %v1371
  %v1440 = vunpack.c.l.b16 %v1372
  %v1441 = vunpack.c.h.b16 %v1372
  %v1442 = vunpack.c.l.b16 %v1373
  %v1443 = vunpack.c.h.b16 %v1373
  %v1444 = vunpack.c.l.b16 %v1374
  %v1445 = vunpack.c.h.b16 %v1374
  %v1446 = vunpack.c.l.b16 %v1375
  %v1447 = vunpack.c.h.b16 %v1375
  %v1448 = vunpack.c.l.b16 %v1376
  %v1449 = vunpack.c.h.b16 %v1376
  %v1450 = vunpack.c.l.b16 %v1377
  %v1451 = vunpack.c.h.b16 %v1377
  %v1452 = vunpack.c.l.b16 %v1378
  %v1453 = vunpack.c.h.b16 %v1378
  %v1454 = vunpack.c.l.b16 %v1379
  %v1455 = vunpack.c.h.b16 %v1379
  %v1456 = vunpack.c.l.b16 %v1380
  %v1457 = vunpack.c.h.b16 %v1380
  %v1458 = vunpack.c.l.b16 %v1381
  %v1459 = vunpack.c.h.b16 %v1381
  %v1460 = vunpack.c.l.b16 %v1382
  %v1461 = vunpack.c.h.b16 %v1382
  %v1462 = vunpack.c.l.b16 %v1383
  %v1463 = vunpack.c.h.b16 %v1383
  %v1464 = vunpack.c.l.b16 %v1384
  %v1465 = vunpack.c.h.b16 %v1384
  %v1466 = vunpack.c.l.b16 %v1385
  %v1467 = vunpack.c.h.b16 %v1385
  %v1468 = vunpack.c.l.b16 %v1386
  %v1469 = vunpack.c.h.b16 %v1386
  %v1470 = vunpack.c.l.b16 %v1387
  %v1471 = vunpack.c.h.b16 %v1387
  %v1472 = vunpack.c.l.b16 %v1388
  %v1473 = vunpack.c.h.b16 %v1388
  %v1474 = vunpack.c.l.b16 %v1389
  %v1475 = vunpack.c.h.b16 %v1389
  %v1476 = vunpack.c.l.b16 %v1390
  %v1477 = vunpack.c.h.b16 %v1390
  %v1478 = vunpack.c.l.b16 %v1391
  %v1479 = vunpack.c.h.b16 %v1391
  %v1480 = vunpack.c.l.b16 %v1392
  %v1481 = vunpack.c.h.b16 %v1392
  %v1482 = vunpack.c.l.b16 %v1393
  %v1483 = vunpack.c.h.b16 %v1393
  %v1484 = vunpack.c.l.b16 %v1394
  %v1485 = vunpack.c.h.b16 %v1394
  %v1486 = vunpack.c.l.b16 %v1395
  %v1487 = vunpack.c.h.b16 %v1395
  %v1488 = vunpack.c.l.b16 %v1396
  %v1489 = vunpack.c.h.b16 %v1396
  %v1490 = vunpack.c.l.b16 %v1397
  %v1491 = vunpack.c.h.b16 %v1397
  %v1492 = vunpack.c.l.b16 %v1398
  %v1493 = vunpack.c.h.b16 %v1398
  %v1494 = vunpack.c.l.b16 %v1399
  %v1495 = vunpack.c.h.b16 %v1399
  %v1496 = vpack.c.b16 %v1434, %v1432
  %v1497 = vpack.c.b16 %v1435, %v1433
  %v1498 = vpack.c.b16 %v1438, %v1436
  %v1499 = vpack.c.b16 %v1439, %v1437
  %v1500 = vpack.c.b16 %v1442, %v1440
  %v1501 = vpack.c.b16 %v1443, %v1441
  %v1502 = vpack.c.b16 %v1446, %v1444
  %v1503 = vpack.c.b16 %v1447, %v1445
  %v1504 = vpack.c.b16 %v1450, %v1448
  %v1505 = vpack.c.b16 %v1451, %v1449
  %v1506 = vpack.c.b16 %v1454, %v1452
  %v1507 = vpack.c.b16 %v1455, %v1453
  %v1508 = vpack.c.b16 %v1458, %v1456
  %v1509 = vpack.c.b16 %v1459, %v1457
  %v1510 = vpack.c.b16 %v1462, %v1460
  %v1511 = vpack.c.b16 %v1463, %v1461
  %v1512 = vpack.c.b16 %v1466, %v1464
  %v1513 = vpack.c.b16 %v1467, %v1465
  %v1514 = vpack.c.b16 %v1470, %v1468
  %v1515 = vpack.c.b16 %v1471, %v1469
  %v1516 = vpack.c.b16 %v1474, %v1472
  %v1517 = vpack.c.b16 %v1475, %v1473
  %v1518 = vpack.c.b16 %v1478, %v1476
  %v1519 = vpack.c.b16 %v1479, %v1477
  %v1520 = vpack.c.b16 %v1482, %v1480
  %v1521 = vpack.c.b16 %v1483, %v1481
  %v1522 = vpack.c.b16 %v1486, %v1484
  %v1523 = vpack.c.b16 %v1487, %v1485
  %v1524 = vpack.c.b16 %v1490, %v1488
  %v1525 = vpack.c.b16 %v1491, %v1489
  %v1526 = vpack.c.b16 %v1494, %v1492
  %v1527 = vpack.c.b16 %v1495, %v1493
  %1560 = vmatprep.subr.bf16.mxu0 %v1497
  %1561 = vmatpush1.bf16.msra.mxu0 %v1496
  %1562 = vmatprep.subr.bf16.mxu0 %v1499
  %1563 = vmatpush1.bf16.msra.mxu0 %v1498
  %1564 = vmatprep.subr.bf16.mxu0 %v1501
  %1565 = vmatpush1.bf16.msra.mxu0 %v1500
  %1566 = vmatprep.subr.bf16.mxu0 %v1503
  %1567 = vmatpush1.bf16.msra.mxu0 %v1502
  %1568 = vmatprep.subr.bf16.mxu0 %v1505
  %1569 = vmatpush1.bf16.msra.mxu0 %v1504
  %1570 = vmatprep.subr.bf16.mxu0 %v1507
  %1571 = vmatpush1.bf16.msra.mxu0 %v1506
  %1572 = vmatprep.subr.bf16.mxu0 %v1509
  %1573 = vmatpush1.bf16.msra.mxu0 %v1508
  %1574 = vmatprep.subr.bf16.mxu0 %v1511
  %1575 = vmatpush1.bf16.msra.mxu0 %v1510
  %1576 = vmatprep.subr.bf16.mxu0 %v1513
  %1577 = vmatpush1.bf16.msra.mxu0 %v1512
  %1578 = vmatprep.subr.bf16.mxu0 %v1515
  %1579 = vmatpush1.bf16.msra.mxu0 %v1514
  %1580 = vmatprep.subr.bf16.mxu0 %v1517
  %1581 = vmatpush1.bf16.msra.mxu0 %v1516
  %1582 = vmatprep.subr.bf16.mxu0 %v1519
  %1583 = vmatpush1.bf16.msra.mxu0 %v1518
  %1584 = vmatprep.subr.bf16.mxu0 %v1521
  %1585 = vmatpush1.bf16.msra.mxu0 %v1520
  %1586 = vmatprep.subr.bf16.mxu0 %v1523
  %1587 = vmatpush1.bf16.msra.mxu0 %v1522
  %1588 = vmatprep.subr.bf16.mxu0 %v1525
  %1589 = vmatpush1.bf16.msra.mxu0 %v1524
  %1590 = vmatprep.subr.bf16.mxu0 %v1527
  %1591 = vmatpush1.bf16.msra.mxu0 %v1526
  %1592 = vmatprep.mubr.bf16.mxu0 %v1327
  %1593 = vmatmul.mubr.bf16.gmra.mrb[0].mxu0 %v1326
  %v1594 = vpop.f32.mrb[0].mxu0
  %v1595 = vadd.f32 0.0, %v1594
  %v1596 = vpop.f32.mrb[0].mxu0
  %v1597 = vadd.f32 0.0, %v1596
  %v1598 = vpop.f32.mrb[0].mxu0
  %v1599 = vadd.f32 0.0, %v1598
  %v1600 = vpop.f32.mrb[0].mxu0
  %v1601 = vadd.f32 0.0, %v1600
  %1602 = vmatprep.mubr.bf16.mxu0 %v1329
  %1603 = vmatmul.mubr.bf16.gmra.mrb[0].mxu0 %v1328
  %v1604 = vpop.f32.mrb[0].mxu0
  %v1605 = vadd.f32 0.0, %v1604
  %v1606 = vpop.f32.mrb[0].mxu0
  %v1607 = vadd.f32 0.0, %v1606
  %v1608 = vpop.f32.mrb[0].mxu0
  %v1609 = vadd.f32 0.0, %v1608
  %v1610 = vpop.f32.mrb[0].mxu0
  %v1611 = vadd.f32 0.0, %v1610
  %1612 = vdwg.mxu0
  %v1614 = vshrl.u32 %v1330, 16
  %v1616 = vrot.slane %v1614, 7
  %v1618 = vshrl.u32 %v1332, 16
  %v1620 = vrot.slane %v1618, 7
  %v1621 = vshll.u32 %v1332, 16
  %v1623 = vor.u32 %v1620, %v1621
  %v1624 = vsel %vm516, %v1616, %v1623
  %v1626 = vshrl.u32 %v1331, 16
  %v1628 = vrot.slane %v1626, 7
  %v1630 = vshrl.u32 %v1333, 16
  %v1632 = vrot.slane %v1630, 7
  %v1633 = vshll.u32 %v1333, 16
  %v1635 = vor.u32 %v1632, %v1633
  %v1636 = vsel %vm516, %v1628, %v1635
  %v1638 = vshrl.u32 %v1334, 16
  %v1640 = vrot.slane %v1638, 7
  %v1641 = vshll.u32 %v1334, 16
  %v1643 = vor.u32 %v1640, %v1641
  %v1644 = vsel %vm516, %v1620, %v1643
  %v1646 = vshrl.u32 %v1335, 16
  %v1648 = vrot.slane %v1646, 7
  %v1649 = vshll.u32 %v1335, 16
  %v1651 = vor.u32 %v1648, %v1649
  %v1652 = vsel %vm516, %v1632, %v1651
  %v1689 = vunpack.c.l.b16 %v1336
  %v1690 = vunpack.c.h.b16 %v1336
  %v1691 = vunpack.c.l.b16 %v1337
  %v1692 = vunpack.c.h.b16 %v1337
  %v1693 = vunpack.c.l.b16 %v1338
  %v1694 = vunpack.c.h.b16 %v1338
  %v1695 = vunpack.c.l.b16 %v1339
  %v1696 = vunpack.c.h.b16 %v1339
  %v1697 = vunpack.c.l.b16 %v1340
  %v1698 = vunpack.c.h.b16 %v1340
  %v1699 = vunpack.c.l.b16 %v1341
  %v1700 = vunpack.c.h.b16 %v1341
  %v1701 = vunpack.c.l.b16 %v1342
  %v1702 = vunpack.c.h.b16 %v1342
  %v1703 = vunpack.c.l.b16 %v1343
  %v1704 = vunpack.c.h.b16 %v1343
  %v1705 = vunpack.c.l.b16 %v1344
  %v1706 = vunpack.c.h.b16 %v1344
  %v1707 = vunpack.c.l.b16 %v1345
  %v1708 = vunpack.c.h.b16 %v1345
  %v1709 = vunpack.c.l.b16 %v1346
  %v1710 = vunpack.c.h.b16 %v1346
  %v1711 = vunpack.c.l.b16 %v1347
  %v1712 = vunpack.c.h.b16 %v1347
  %v1713 = vunpack.c.l.b16 %v1348
  %v1714 = vunpack.c.h.b16 %v1348
  %v1715 = vunpack.c.l.b16 %v1349
  %v1716 = vunpack.c.h.b16 %v1349
  %v1717 = vunpack.c.l.b16 %v1350
  %v1718 = vunpack.c.h.b16 %v1350
  %v1719 = vunpack.c.l.b16 %v1351
  %v1720 = vunpack.c.h.b16 %v1351
  %v1721 = vunpack.c.l.b16 %v1352
  %v1722 = vunpack.c.h.b16 %v1352
  %v1723 = vunpack.c.l.b16 %v1353
  %v1724 = vunpack.c.h.b16 %v1353
  %v1725 = vunpack.c.l.b16 %v1354
  %v1726 = vunpack.c.h.b16 %v1354
  %v1727 = vunpack.c.l.b16 %v1355
  %v1728 = vunpack.c.h.b16 %v1355
  %v1729 = vunpack.c.l.b16 %v1356
  %v1730 = vunpack.c.h.b16 %v1356
  %v1731 = vunpack.c.l.b16 %v1357
  %v1732 = vunpack.c.h.b16 %v1357
  %v1733 = vunpack.c.l.b16 %v1358
  %v1734 = vunpack.c.h.b16 %v1358
  %v1735 = vunpack.c.l.b16 %v1359
  %v1736 = vunpack.c.h.b16 %v1359
  %v1737 = vunpack.c.l.b16 %v1360
  %v1738 = vunpack.c.h.b16 %v1360
  %v1739 = vunpack.c.l.b16 %v1361
  %v1740 = vunpack.c.h.b16 %v1361
  %v1741 = vunpack.c.l.b16 %v1362
  %v1742 = vunpack.c.h.b16 %v1362
  %v1743 = vunpack.c.l.b16 %v1363
  %v1744 = vunpack.c.h.b16 %v1363
  %v1745 = vunpack.c.l.b16 %v1364
  %v1746 = vunpack.c.h.b16 %v1364
  %v1747 = vunpack.c.l.b16 %v1365
  %v1748 = vunpack.c.h.b16 %v1365
  %v1749 = vunpack.c.l.b16 %v1366
  %v1750 = vunpack.c.h.b16 %v1366
  %v1751 = vunpack.c.l.b16 %v1367
  %v1752 = vunpack.c.h.b16 %v1367
  %v1753 = vpack.c.b16 %v1691, %v1689
  %v1754 = vpack.c.b16 %v1692, %v1690
  %v1755 = vpack.c.b16 %v1695, %v1693
  %v1756 = vpack.c.b16 %v1696, %v1694
  %v1757 = vpack.c.b16 %v1699, %v1697
  %v1758 = vpack.c.b16 %v1700, %v1698
  %v1759 = vpack.c.b16 %v1703, %v1701
  %v1760 = vpack.c.b16 %v1704, %v1702
  %v1761 = vpack.c.b16 %v1707, %v1705
  %v1762 = vpack.c.b16 %v1708, %v1706
  %v1763 = vpack.c.b16 %v1711, %v1709
  %v1764 = vpack.c.b16 %v1712, %v1710
  %v1765 = vpack.c.b16 %v1715, %v1713
  %v1766 = vpack.c.b16 %v1716, %v1714
  %v1767 = vpack.c.b16 %v1719, %v1717
  %v1768 = vpack.c.b16 %v1720, %v1718
  %v1769 = vpack.c.b16 %v1723, %v1721
  %v1770 = vpack.c.b16 %v1724, %v1722
  %v1771 = vpack.c.b16 %v1727, %v1725
  %v1772 = vpack.c.b16 %v1728, %v1726
  %v1773 = vpack.c.b16 %v1731, %v1729
  %v1774 = vpack.c.b16 %v1732, %v1730
  %v1775 = vpack.c.b16 %v1735, %v1733
  %v1776 = vpack.c.b16 %v1736, %v1734
  %v1777 = vpack.c.b16 %v1739, %v1737
  %v1778 = vpack.c.b16 %v1740, %v1738
  %v1779 = vpack.c.b16 %v1743, %v1741
  %v1780 = vpack.c.b16 %v1744, %v1742
  %v1781 = vpack.c.b16 %v1747, %v1745
  %v1782 = vpack.c.b16 %v1748, %v1746
  %v1783 = vpack.c.b16 %v1751, %v1749
  %v1784 = vpack.c.b16 %v1752, %v1750
  %1817 = vmatprep.subr.bf16.mxu0 %v1754
  %1818 = vmatpush1.bf16.msra.mxu0 %v1753
  %1819 = vmatprep.subr.bf16.mxu0 %v1756
  %1820 = vmatpush1.bf16.msra.mxu0 %v1755
  %1821 = vmatprep.subr.bf16.mxu0 %v1758
  %1822 = vmatpush1.bf16.msra.mxu0 %v1757
  %1823 = vmatprep.subr.bf16.mxu0 %v1760
  %1824 = vmatpush1.bf16.msra.mxu0 %v1759
  %1825 = vmatprep.subr.bf16.mxu0 %v1762
  %1826 = vmatpush1.bf16.msra.mxu0 %v1761
  %1827 = vmatprep.subr.bf16.mxu0 %v1764
  %1828 = vmatpush1.bf16.msra.mxu0 %v1763
  %1829 = vmatprep.subr.bf16.mxu0 %v1766
  %1830 = vmatpush1.bf16.msra.mxu0 %v1765
  %1831 = vmatprep.subr.bf16.mxu0 %v1768
  %1832 = vmatpush1.bf16.msra.mxu0 %v1767
  %1833 = vmatprep.subr.bf16.mxu0 %v1770
  %1834 = vmatpush1.bf16.msra.mxu0 %v1769
  %1835 = vmatprep.subr.bf16.mxu0 %v1772
  %1836 = vmatpush1.bf16.msra.mxu0 %v1771
  %1837 = vmatprep.subr.bf16.mxu0 %v1774
  %1838 = vmatpush1.bf16.msra.mxu0 %v1773
  %1839 = vmatprep.subr.bf16.mxu0 %v1776
  %1840 = vmatpush1.bf16.msra.mxu0 %v1775
  %1841 = vmatprep.subr.bf16.mxu0 %v1778
  %1842 = vmatpush1.bf16.msra.mxu0 %v1777
  %1843 = vmatprep.subr.bf16.mxu0 %v1780
  %1844 = vmatpush1.bf16.msra.mxu0 %v1779
  %1845 = vmatprep.subr.bf16.mxu0 %v1782
  %1846 = vmatpush1.bf16.msra.mxu0 %v1781
  %1847 = vmatprep.subr.bf16.mxu0 %v1784
  %1848 = vmatpush1.bf16.msra.mxu0 %v1783
  %1849 = vmatprep.mubr.bf16.mxu0 %v1636
  %1850 = vmatmul.mubr.bf16.gmra.mrb[0].mxu0 %v1624
  %v1851 = vpop.f32.mrb[0].mxu0
  %v1852 = vadd.f32 %v1595, %v1851
  %v1853 = vpop.f32.mrb[0].mxu0
  %v1854 = vadd.f32 %v1597, %v1853
  %v1855 = vpop.f32.mrb[0].mxu0
  %v1856 = vadd.f32 %v1599, %v1855
  %v1857 = vpop.f32.mrb[0].mxu0
  %v1858 = vadd.f32 %v1601, %v1857
  %1859 = vmatprep.mubr.bf16.mxu0 %v1652
  %1860 = vmatmul.mubr.bf16.gmra.mrb[0].mxu0 %v1644
  %v1861 = vpop.f32.mrb[0].mxu0
  %v1862 = vadd.f32 %v1605, %v1861
  %v1863 = vpop.f32.mrb[0].mxu0
  %v1864 = vadd.f32 %v1607, %v1863
  %v1865 = vpop.f32.mrb[0].mxu0
  %v1866 = vadd.f32 %v1609, %v1865
  %v1867 = vpop.f32.mrb[0].mxu0
  %v1868 = vadd.f32 %v1611, %v1867
  %1869 = vdwg.mxu0
  %v1870 = vld [vmem:[#allocation2 + $0x10] sm:$0xff]
  %v1871 = vld [vmem:[#allocation2 + $0x18] sm:$0xff]
  %v1872 = vld [vmem:[#allocation2 + $0x20] sm:$0xff]
  %v1873 = vld [vmem:[#allocation2 + $0x28] sm:$0xff]
  %v1874 = vld [vmem:[#allocation2 + $0x30] sm:$0x1]
  %v1875 = vld [vmem:[#allocation2 + $0x38] sm:$0x1]
  %v1876 = vmul.bf16 %v1870, %v786
  %v1877 = vmul.bf16 %v1871, %v786
  %v1878 = vmul.bf16 %v1872, %v794
  %v1879 = vmul.bf16 %v1873, %v794
  %v1880 = vmul.bf16 %v1874, %v790
  %v1881 = vmul.bf16 %v1875, %v790
  %v1882 = vld [vmem:[%s2 + $0x200] sm:$0xff]
  %v1883 = vld [vmem:[%s2 + $0x208] sm:$0xff]
  %v1884 = vld [vmem:[%s2 + $0x210] sm:$0xff]
  %v1885 = vld [vmem:[%s2 + $0x218] sm:$0xff]
  %v1886 = vld [vmem:[%s2 + $0x220] sm:$0xff]
  %v1887 = vld [vmem:[%s2 + $0x228] sm:$0xff]
  %v1888 = vld [vmem:[%s2 + $0x230] sm:$0xff]
  %v1889 = vld [vmem:[%s2 + $0x238] sm:$0xff]
  %v1890 = vld [vmem:[%s2 + $0x240] sm:$0xff]
  %v1891 = vld [vmem:[%s2 + $0x248] sm:$0xff]
  %v1892 = vld [vmem:[%s2 + $0x250] sm:$0xff]
  %v1893 = vld [vmem:[%s2 + $0x258] sm:$0xff]
  %v1894 = vld [vmem:[%s2 + $0x260] sm:$0xff]
  %v1895 = vld [vmem:[%s2 + $0x268] sm:$0xff]
  %v1896 = vld [vmem:[%s2 + $0x270] sm:$0xff]
  %v1897 = vld [vmem:[%s2 + $0x278] sm:$0xff]
  %v1898 = vld [vmem:[%s2 + $0x280] sm:$0xff]
  %v1899 = vld [vmem:[%s2 + $0x288] sm:$0xff]
  %v1900 = vld [vmem:[%s2 + $0x290] sm:$0xff]
  %v1901 = vld [vmem:[%s2 + $0x298] sm:$0xff]
  %v1902 = vld [vmem:[%s2 + $0x2a0] sm:$0xff]
  %v1903 = vld [vmem:[%s2 + $0x2a8] sm:$0xff]
  %v1904 = vld [vmem:[%s2 + $0x2b0] sm:$0xff]
  %v1905 = vld [vmem:[%s2 + $0x2b8] sm:$0xff]
  %v1906 = vld [vmem:[%s2 + $0x2c0] sm:$0xff]
  %v1907 = vld [vmem:[%s2 + $0x2c8] sm:$0xff]
  %v1908 = vld [vmem:[%s2 + $0x2d0] sm:$0xff]
  %v1909 = vld [vmem:[%s2 + $0x2d8] sm:$0xff]
  %v1910 = vld [vmem:[%s2 + $0x2e0] sm:$0xff]
  %v1911 = vld [vmem:[%s2 + $0x2e8] sm:$0xff]
  %v1912 = vld [vmem:[%s2 + $0x2f0] sm:$0xff]
  %v1913 = vld [vmem:[%s2 + $0x2f8] sm:$0xff]
  %v1915 = vshrl.u32 %v1876, 16
  %v1917 = vshll.u32 %v1876, 16
  %v1919 = vrot.slane %v1917, 1
  %v1920 = vor.u32 %v1915, %v1919
  %v1922 = vshll.u32 %v1878, 16
  %v1924 = vrot.slane %v1922, 1
  %v1925 = vsel %vm214, %v1920, %v1924
  %v1927 = vshrl.u32 %v1877, 16
  %v1929 = vshll.u32 %v1877, 16
  %v1931 = vrot.slane %v1929, 1
  %v1932 = vor.u32 %v1927, %v1931
  %v1934 = vshll.u32 %v1879, 16
  %v1936 = vrot.slane %v1934, 1
  %v1937 = vsel %vm214, %v1932, %v1936
  %v1938 = vshrl.u32 %v1878, 16
  %v1940 = vor.u32 %v1938, %v1924
  %v1942 = vshll.u32 %v1880, 16
  %v1944 = vrot.slane %v1942, 1
  %v1945 = vsel %vm214, %v1940, %v1944
  %v1946 = vshrl.u32 %v1879, 16
  %v1948 = vor.u32 %v1946, %v1936
  %v1950 = vshll.u32 %v1881, 16
  %v1952 = vrot.slane %v1950, 1
  %v1953 = vsel %vm214, %v1948, %v1952
  %v1990 = vunpack.c.l.b16 %v1882
  %v1991 = vunpack.c.h.b16 %v1882
  %v1992 = vunpack.c.l.b16 %v1883
  %v1993 = vunpack.c.h.b16 %v1883
  %v1994 = vunpack.c.l.b16 %v1884
  %v1995 = vunpack.c.h.b16 %v1884
  %v1996 = vunpack.c.l.b16 %v1885
  %v1997 = vunpack.c.h.b16 %v1885
  %v1998 = vunpack.c.l.b16 %v1886
  %v1999 = vunpack.c.h.b16 %v1886
  %v2000 = vunpack.c.l.b16 %v1887
  %v2001 = vunpack.c.h.b16 %v1887
  %v2002 = vunpack.c.l.b16 %v1888
  %v2003 = vunpack.c.h.b16 %v1888
  %v2004 = vunpack.c.l.b16 %v1889
  %v2005 = vunpack.c.h.b16 %v1889
  %v2006 = vunpack.c.l.b16 %v1890
  %v2007 = vunpack.c.h.b16 %v1890
  %v2008 = vunpack.c.l.b16 %v1891
  %v2009 = vunpack.c.h.b16 %v1891
  %v2010 = vunpack.c.l.b16 %v1892
  %v2011 = vunpack.c.h.b16 %v1892
  %v2012 = vunpack.c.l.b16 %v1893
  %v2013 = vunpack.c.h.b16 %v1893
  %v2014 = vunpack.c.l.b16 %v1894
  %v2015 = vunpack.c.h.b16 %v1894
  %v2016 = vunpack.c.l.b16 %v1895
  %v2017 = vunpack.c.h.b16 %v1895
  %v2018 = vunpack.c.l.b16 %v1896
  %v2019 = vunpack.c.h.b16 %v1896
  %v2020 = vunpack.c.l.b16 %v1897
  %v2021 = vunpack.c.h.b16 %v1897
  %v2022 = vunpack.c.l.b16 %v1898
  %v2023 = vunpack.c.h.b16 %v1898
  %v2024 = vunpack.c.l.b16 %v1899
  %v2025 = vunpack.c.h.b16 %v1899
  %v2026 = vunpack.c.l.b16 %v1900
  %v2027 = vunpack.c.h.b16 %v1900
  %v2028 = vunpack.c.l.b16 %v1901
  %v2029 = vunpack.c.h.b16 %v1901
  %v2030 = vunpack.c.l.b16 %v1902
  %v2031 = vunpack.c.h.b16 %v1902
  %v2032 = vunpack.c.l.b16 %v1903
  %v2033 = vunpack.c.h.b16 %v1903
  %v2034 = vunpack.c.l.b16 %v1904
  %v2035 = vunpack.c.h.b16 %v1904
  %v2036 = vunpack.c.l.b16 %v1905
  %v2037 = vunpack.c.h.b16 %v1905
  %v2038 = vunpack.c.l.b16 %v1906
  %v2039 = vunpack.c.h.b16 %v1906
  %v2040 = vunpack.c.l.b16 %v1907
  %v2041 = vunpack.c.h.b16 %v1907
  %v2042 = vunpack.c.l.b16 %v1908
  %v2043 = vunpack.c.h.b16 %v1908
  %v2044 = vunpack.c.l.b16 %v1909
  %v2045 = vunpack.c.h.b16 %v1909
  %v2046 = vunpack.c.l.b16 %v1910
  %v2047 = vunpack.c.h.b16 %v1910
  %v2048 = vunpack.c.l.b16 %v1911
  %v2049 = vunpack.c.h.b16 %v1911
  %v2050 = vunpack.c.l.b16 %v1912
  %v2051 = vunpack.c.h.b16 %v1912
  %v2052 = vunpack.c.l.b16 %v1913
  %v2053 = vunpack.c.h.b16 %v1913
  %v2054 = vpack.c.b16 %v1992, %v1990
  %v2055 = vpack.c.b16 %v1993, %v1991
  %v2056 = vpack.c.b16 %v1996, %v1994
  %v2057 = vpack.c.b16 %v1997, %v1995
  %v2058 = vpack.c.b16 %v2000, %v1998
  %v2059 = vpack.c.b16 %v2001, %v1999
  %v2060 = vpack.c.b16 %v2004, %v2002
  %v2061 = vpack.c.b16 %v2005, %v2003
  %v2062 = vpack.c.b16 %v2008, %v2006
  %v2063 = vpack.c.b16 %v2009, %v2007
  %v2064 = vpack.c.b16 %v2012, %v2010
  %v2065 = vpack.c.b16 %v2013, %v2011
  %v2066 = vpack.c.b16 %v2016, %v2014
  %v2067 = vpack.c.b16 %v2017, %v2015
  %v2068 = vpack.c.b16 %v2020, %v2018
  %v2069 = vpack.c.b16 %v2021, %v2019
  %v2070 = vpack.c.b16 %v2024, %v2022
  %v2071 = vpack.c.b16 %v2025, %v2023
  %v2072 = vpack.c.b16 %v2028, %v2026
  %v2073 = vpack.c.b16 %v2029, %v2027
  %v2074 = vpack.c.b16 %v2032, %v2030
  %v2075 = vpack.c.b16 %v2033, %v2031
  %v2076 = vpack.c.b16 %v2036, %v2034
  %v2077 = vpack.c.b16 %v2037, %v2035
  %v2078 = vpack.c.b16 %v2040, %v2038
  %v2079 = vpack.c.b16 %v2041, %v2039
  %v2080 = vpack.c.b16 %v2044, %v2042
  %v2081 = vpack.c.b16 %v2045, %v2043
  %v2082 = vpack.c.b16 %v2048, %v2046
  %v2083 = vpack.c.b16 %v2049, %v2047
  %v2084 = vpack.c.b16 %v2052, %v2050
  %v2085 = vpack.c.b16 %v2053, %v2051
  %2118 = vmatprep.subr.bf16.mxu0 %v2055
  %2119 = vmatpush1.bf16.msra.mxu0 %v2054
  %2120 = vmatprep.subr.bf16.mxu0 %v2057
  %2121 = vmatpush1.bf16.msra.mxu0 %v2056
  %2122 = vmatprep.subr.bf16.mxu0 %v2059
  %2123 = vmatpush1.bf16.msra.mxu0 %v2058
  %2124 = vmatprep.subr.bf16.mxu0 %v2061
  %2125 = vmatpush1.bf16.msra.mxu0 %v2060
  %2126 = vmatprep.subr.bf16.mxu0 %v2063
  %2127 = vmatpush1.bf16.msra.mxu0 %v2062
  %2128 = vmatprep.subr.bf16.mxu0 %v2065
  %2129 = vmatpush1.bf16.msra.mxu0 %v2064
  %2130 = vmatprep.subr.bf16.mxu0 %v2067
  %2131 = vmatpush1.bf16.msra.mxu0 %v2066
  %2132 = vmatprep.subr.bf16.mxu0 %v2069
  %2133 = vmatpush1.bf16.msra.mxu0 %v2068
  %2134 = vmatprep.subr.bf16.mxu0 %v2071
  %2135 = vmatpush1.bf16.msra.mxu0 %v2070
  %2136 = vmatprep.subr.bf16.mxu0 %v2073
  %2137 = vmatpush1.bf16.msra.mxu0 %v2072
  %2138 = vmatprep.subr.bf16.mxu0 %v2075
  %2139 = vmatpush1.bf16.msra.mxu0 %v2074
  %2140 = vmatprep.subr.bf16.mxu0 %v2077
  %2141 = vmatpush1.bf16.msra.mxu0 %v2076
  %2142 = vmatprep.subr.bf16.mxu0 %v2079
  %2143 = vmatpush1.bf16.msra.mxu0 %v2078
  %2144 = vmatprep.subr.bf16.mxu0 %v2081
  %2145 = vmatpush1.bf16.msra.mxu0 %v2080
  %2146 = vmatprep.subr.bf16.mxu0 %v2083
  %2147 = vmatpush1.bf16.msra.mxu0 %v2082
  %2148 = vmatprep.subr.bf16.mxu0 %v2085
  %2149 = vmatpush1.bf16.msra.mxu0 %v2084
  %2150 = vmatprep.mubr.bf16.mxu0 %v1937
  %2151 = vmatmul.mubr.bf16.gmra.mrb[0].mxu0 %v1925
  %v2152 = vpop.f32.mrb[0].mxu0
  %v2153 = vadd.f32 0.0, %v2152
  %v2154 = vpop.f32.mrb[0].mxu0
  %v2155 = vadd.f32 0.0, %v2154
  %v2156 = vpop.f32.mrb[0].mxu0
  %v2157 = vadd.f32 0.0, %v2156
  %v2158 = vpop.f32.mrb[0].mxu0
  %v2159 = vadd.f32 0.0, %v2158
  %2160 = vmatprep.mubr.bf16.mxu0 %v1953
  %2161 = vmatmul.mubr.bf16.gmra.mrb[0].mxu0 %v1945
  %v2162 = vpop.f32.mrb[0].mxu0
  %v2163 = vadd.f32 0.0, %v2162
  %v2164 = vpop.f32.mrb[0].mxu0
  %v2165 = vadd.f32 0.0, %v2164
  %v2166 = vpop.f32.mrb[0].mxu0
  %v2167 = vadd.f32 0.0, %v2166
  %v2168 = vpop.f32.mrb[0].mxu0
  %v2169 = vadd.f32 0.0, %v2168
  %2170 = vdwg.mxu0
  %v2171 = vadd.f32 %v1852, %v2153
  %v2172 = vadd.f32 %v1854, %v2155
  %v2173 = vadd.f32 %v1856, %v2157
  %v2174 = vadd.f32 %v1858, %v2159
  %v2175 = vadd.f32 %v1862, %v2163
  %v2176 = vadd.f32 %v1864, %v2165
  %v2177 = vadd.f32 %v1866, %v2167
  %v2178 = vadd.f32 %v1868, %v2169
  %v2179 = vld [vmem:[%s5] sm:$0x3]
  %v2180 = vld [vmem:[%s6] sm:$0x3]
  %v2181 = vadd.f32 %v2171, %v2173
  %v2182 = vadd.f32 %v2181, %v2175
  %v2183 = vadd.f32 %v2182, %v2177
  %v2184 = vrot.slane %v2183, 4
  %v2185 = vadd.f32 %v2183, %v2184
  %v2186 = vrot.slane %v2185, 2
  %v2187 = vadd.f32 %v2185, %v2186
  %v2188 = vrot.slane %v2187, 1
  %v2189 = vadd.f32 %v2187, %v2188
  %v2190 = vadd.f32 %v2172, %v2174
  %v2191 = vadd.f32 %v2190, %v2176
  %v2192 = vadd.f32 %v2191, %v2178
  %v2193 = vrot.slane %v2192, 4
  %v2194 = vadd.f32 %v2192, %v2193
  %v2195 = vrot.slane %v2194, 2
  %v2196 = vadd.f32 %v2194, %v2195
  %v2197 = vrot.slane %v2196, 1
  %v2198 = vadd.f32 %v2196, %v2197
  %2199 = vrot.lane.b32.xlu0 %v2189, 16
  %v2200 = vpop.permute.xlu0 %2199
  %2201 = vrot.lane.b32.xlu0 %v2198, 16
  %v2202 = vpop.permute.xlu0 %2201
  %v2203 = vsel %vm1127, %v2200, %v2202
  %v2204 = vsel %vm1127, %v2202, %v2200
  %v2205 = vadd.f32 %v2189, %v2204
  %v2206 = vadd.f32 %v2198, %v2203
  %2207 = vrot.lane.b32.xlu0 %v2205, 32
  %v2208 = vpop.permute.xlu0 %2207
  %2209 = vrot.lane.b32.xlu0 %v2206, 32
  %v2210 = vpop.permute.xlu0 %2209
  %v2211 = vsel %vm1136, %v2208, %v2210
  %v2212 = vsel %vm1136, %v2210, %v2208
  %v2213 = vadd.f32 %v2205, %v2212
  %v2214 = vadd.f32 %v2206, %v2211
  %2215 = vrot.lane.b32.xlu0 %v2213, 64
  %v2216 = vpop.permute.xlu0 %2215
  %2217 = vrot.lane.b32.xlu0 %v2214, 64
  %v2218 = vpop.permute.xlu0 %2217
  %v2219 = vsel %vm1145, %v2216, %v2218
  %v2220 = vsel %vm1145, %v2218, %v2216
  %v2221 = vadd.f32 %v2213, %v2220
  %v2222 = vadd.f32 %v2214, %v2219
  %v2223 = vadd.f32 %v2221, %v2222
  %v2224 = vmul.f32 %v2223, 0.001953125
  %v2225 = vmul.f32 %v2171, %v2171
  %v2226 = vmul.f32 %v2172, %v2172
  %v2227 = vmul.f32 %v2173, %v2173
  %v2228 = vmul.f32 %v2174, %v2174
  %v2229 = vmul.f32 %v2175, %v2175
  %v2230 = vmul.f32 %v2176, %v2176
  %v2231 = vmul.f32 %v2177, %v2177
  %v2232 = vmul.f32 %v2178, %v2178
  %v2233 = vadd.f32 %v2225, %v2227
  %v2234 = vadd.f32 %v2233, %v2229
  %v2235 = vadd.f32 %v2234, %v2231
  %v2236 = vrot.slane %v2235, 4
  %v2237 = vadd.f32 %v2235, %v2236
  %v2238 = vrot.slane %v2237, 2
  %v2239 = vadd.f32 %v2237, %v2238
  %v2240 = vrot.slane %v2239, 1
  %v2241 = vadd.f32 %v2239, %v2240
  %v2242 = vadd.f32 %v2226, %v2228
  %v2243 = vadd.f32 %v2242, %v2230
  %v2244 = vadd.f32 %v2243, %v2232
  %v2245 = vrot.slane %v2244, 4
  %v2246 = vadd.f32 %v2244, %v2245
  %v2247 = vrot.slane %v2246, 2
  %v2248 = vadd.f32 %v2246, %v2247
  %v2249 = vrot.slane %v2248, 1
  %v2250 = vadd.f32 %v2248, %v2249
  %2251 = vrot.lane.b32.xlu0 %v2241, 16
  %v2252 = vpop.permute.xlu0 %2251
  %2253 = vrot.lane.b32.xlu0 %v2250, 16
  %v2254 = vpop.permute.xlu0 %2253
  %v2255 = vsel %vm1127, %v2252, %v2254
  %v2256 = vsel %vm1127, %v2254, %v2252
  %v2257 = vadd.f32 %v2241, %v2256
  %v2258 = vadd.f32 %v2250, %v2255
  %2259 = vrot.lane.b32.xlu0 %v2257, 32
  %v2260 = vpop.permute.xlu0 %2259
  %2261 = vrot.lane.b32.xlu0 %v2258, 32
  %v2262 = vpop.permute.xlu0 %2261
  %v2263 = vsel %vm1136, %v2260, %v2262
  %v2264 = vsel %vm1136, %v2262, %v2260
  %v2265 = vadd.f32 %v2257, %v2264
  %v2266 = vadd.f32 %v2258, %v2263
  %2267 = vrot.lane.b32.xlu0 %v2265, 64
  %v2268 = vpop.permute.xlu0 %2267
  %2269 = vrot.lane.b32.xlu0 %v2266, 64
  %v2270 = vpop.permute.xlu0 %2269
  %v2271 = vsel %vm1145, %v2268, %v2270
  %v2272 = vsel %vm1145, %v2270, %v2268
  %v2273 = vadd.f32 %v2265, %v2272
  %v2274 = vadd.f32 %v2266, %v2271
  %v2275 = vadd.f32 %v2273, %v2274
  %v2276 = vmul.f32 %v2275, 0.001953125
  %v2277 = vmul.f32 %v2224, %v2224
  %v2278 = vsub.f32 %v2276, %v2277
  %v2279 = vadd.f32 %v2278, 1e-05
  %v2280 = vrsqrt.pop %v2279
  %v2282 = vlaneseq
  %v2283 = vshrl.u32 %v2282, 7
  %v2284 = vsub.s32 0, %v2283
  %v2285 = vrot.slane %v2179, %v2284
  %v2286 = vlaneseq
  %v2287 = vshrl.u32 %v2286, 7
  %v2288 = vsub.s32 1, %v2287
  %v2289 = vrot.slane %v2179, %v2288
  %v2292 = vmul.f32 %v2280, %v2285
  %v2293 = vmul.f32 %v2280, %v2289
  %v2294 = vlaneseq
  %v2295 = vshrl.u32 %v2294, 7
  %v2296 = vsub.s32 0, %v2295
  %v2297 = vrot.slane %v2224, %v2296
  %v2298 = vsub.f32 %v2171, %v2297
  %v2299 = vsub.f32 %v2172, %v2297
  %v2300 = vsub.f32 %v2173, %v2297
  %v2301 = vsub.f32 %v2174, %v2297
  %v2302 = vsub.f32 %v2175, %v2297
  %v2303 = vsub.f32 %v2176, %v2297
  %v2304 = vsub.f32 %v2177, %v2297
  %v2305 = vsub.f32 %v2178, %v2297
  %v2306 = vlaneseq
  %v2307 = vshrl.u32 %v2306, 7
  %v2308 = vsub.s32 0, %v2307
  %v2309 = vrot.slane %v2292, %v2308
  %v2310 = vlaneseq
  %v2311 = vshrl.u32 %v2310, 7
  %v2312 = vsub.s32 0, %v2311
  %v2313 = vrot.slane %v2293, %v2312
  %v2314 = vmul.f32 %v2298, %v2309
  %v2315 = vmul.f32 %v2299, %v2313
  %v2316 = vmul.f32 %v2300, %v2309
  %v2317 = vmul.f32 %v2301, %v2313
  %v2318 = vmul.f32 %v2302, %v2309
  %v2319 = vmul.f32 %v2303, %v2313
  %v2320 = vmul.f32 %v2304, %v2309
  %v2321 = vmul.f32 %v2305, %v2313
  %v2323 = vlaneseq
  %v2324 = vshrl.u32 %v2323, 7
  %v2325 = vsub.s32 0, %v2324
  %v2326 = vrot.slane %v2180, %v2325
  %v2327 = vlaneseq
  %v2328 = vshrl.u32 %v2327, 7
  %v2329 = vsub.s32 1, %v2328
  %v2330 = vrot.slane %v2180, %v2329
  %v2333 = vadd.f32 %v2314, %v2326
  %v2334 = vadd.f32 %v2315, %v2330
  %v2335 = vadd.f32 %v2316, %v2326
  %v2336 = vadd.f32 %v2317, %v2330
  %v2337 = vadd.f32 %v2318, %v2326
  %v2338 = vadd.f32 %v2319, %v2330
  %v2339 = vadd.f32 %v2320, %v2326
  %v2340 = vadd.f32 %v2321, %v2330
  %v2341 = vadd.f32 %v2333, %v156
  %v2342 = vadd.f32 %v2334, %v157
  %v2343 = vadd.f32 %v2335, %v158
  %v2344 = vadd.f32 %v2336, %v159
  %v2345 = vadd.f32 %v2337, %v160
  %v2346 = vadd.f32 %v2338, %v161
  %v2347 = vadd.f32 %v2339, %v162
  %v2348 = vadd.f32 %v2340, %v163
  %v2349 = vmax.f32 %v2341, -1.0
  %v2350 = vmax.f32 %v2342, -1.0
  %v2351 = vmax.f32 %v2343, -1.0
  %v2352 = vmax.f32 %v2344, -1.0
  %v2353 = vmax.f32 %v2345, -1.0
  %v2354 = vmax.f32 %v2346, -1.0
  %v2355 = vmax.f32 %v2347, -1.0
  %v2356 = vmax.f32 %v2348, -1.0
  %v2357 = vmin.f32 %v2349, 1.0
  %v2358 = vmin.f32 %v2350, 1.0
  %v2359 = vmin.f32 %v2351, 1.0
  %v2360 = vmin.f32 %v2352, 1.0
  %v2361 = vmin.f32 %v2353, 1.0
  %v2362 = vmin.f32 %v2354, 1.0
  %v2363 = vmin.f32 %v2355, 1.0
  %v2364 = vmin.f32 %v2356, 1.0
  %2365 = vst [vmem:[%s7] sm:$0xff] %v2357
  %2366 = vst [vmem:[%s7 + $0x8] sm:$0xff] %v2358
  %2367 = vst [vmem:[%s7 + $0x10] sm:$0xff] %v2359
  %2368 = vst [vmem:[%s7 + $0x18] sm:$0xff] %v2360
  %2369 = vst [vmem:[%s7 + $0x20] sm:$0xff] %v2361
  %2370 = vst [vmem:[%s7 + $0x28] sm:$0xff] %v2362
  %2371 = vst [vmem:[%s7 + $0x30] sm:$0xff] %v2363
  %2372 = vst [vmem:[%s7 + $0x38] sm:$0xff] %v2364
  // Predicated region
  $region30: #{resnet_block_b_forward.1} parent=0 // pred_check
    _
  $region31: #{resnet_block_b_forward.1} parent=0 // pred_check_branch
    %2374 = sbr.rel (0) target = $region33
  $region32: #{resnet_block_b_forward.1} parent=0 // pred_region
    _
  $region33: #{resnet_block_b_forward.1} parent=0 // pred_fallthru
    _
  // Predicated region
  $region34: #{resnet_block_b_forward.1} parent=0 // pred_check
    _
  $region35: #{resnet_block_b_forward.1} parent=0 // pred_check_branch
    %2376 = sbr.rel (0) target = $region37
  $region36: #{resnet_block_b_forward.1} parent=0 // pred_region
    _
  $region37: #{resnet_block_b_forward.1} parent=0 // pred_fallthru
    _

</llo_original>
